<compile_context>
chip_gen: v7x
topology: tpu7x:2x2x1
jax: 0.10.0
libtpu: 0.0.40
codegen_flags: <defaults>
</compile_context>

<pallas_src>
import functools

import jax
import jax.numpy as jnp
from jax.experimental import pallas as pl
from jax.experimental.pallas import tpu as pltpu

K_HEAD = 2  # static number of Helper heads


# ---------------------------------------------------------------------------
# Small shared math helpers
# ---------------------------------------------------------------------------
def _leaky_relu(x, slope=0.1):
    return jnp.where(x >= 0, x, slope * x)


def _gru_combine(gi, gh, h, hdim):
    # PyTorch nn.GRUCell gate math given gi = x@W_ih+b_ih, gh = h@W_hh+b_hh (r, z, n order)
    r = jax.nn.sigmoid(gi[:, :hdim] + gh[:, :hdim])
    z = jax.nn.sigmoid(gi[:, hdim:2 * hdim] + gh[:, hdim:2 * hdim])
    n = jnp.tanh(gi[:, 2 * hdim:] + r * gh[:, 2 * hdim:])
    return (1.0 - z) * n + z * h


def _pm_offsets(H, K):
    """Column offsets inside the PM slab (shared by packer and kernel)."""
    KH, KP = K * H, H
    o = {}
    o["rep"] = 0
    o["hc"] = o["rep"] + KH
    o["wb"] = o["hc"] + KP
    o["gmA"] = o["wb"] + H
    o["gmB"] = o["gmA"] + H
    o["gsA"] = o["gmB"] + H
    o["gsB"] = o["gsA"] + H
    o["we"] = o["gsB"] + H
    o["ghm"] = o["we"] + H
    o["ghs"] = o["ghm"] + 3 * H
    o["end"] = o["ghs"] + 3 * H
    return o


# ---------------------------------------------------------------------------
# Pallas kernel: everything VMEM-resident, parameters pre-packed into 3 slabs
# ---------------------------------------------------------------------------
def _sconvr1_kernel(v_ref, s_ref, adj_ref, seg_ref, segT_ref,
                    pv_ref, ps_ref, pm_ref, out_ref, *, N, G, D, H, K):
    f32 = jnp.float32
    KH = K * H
    KP = H            # attention-logit width, padded from K up to H (lane friendly)
    BR = KH           # bias-row index inside the PM slab (PM has KH weight rows + 1)
    o = _pm_offsets(H, K)

    v = v_ref[...]
    s = s_ref[...]
    adj = adj_ref[...]
    seg = seg_ref[...]
    segT = segT_ref[...]

    def mm(a, b):
        return jnp.dot(a, b, preferred_element_type=f32)

    def pm_w(off, width, rows=H):
        return pm_ref[:rows, off:off + width]

    def pm_b(off, width):
        return pm_ref[BR:BR + 1, off:off + width]

    # ---- Stage 1: fused input projections ---------------------------------
    # every linear whose input is v (resp. s) is evaluated by one matmul
    pv = mm(v, pv_ref[:D, :]) + pv_ref[D:D + 1, :]        # [N, 2KH + 4H]
    ps = mm(s, ps_ref[:D, :]) + ps_ref[D:D + 1, :]        # [G, KH + 5H]

    d_node = jnp.tanh(pv[:, 0:KH])                        # heads fused: tanh(hA_k(v))
    hDv = pv[:, KH:2 * KH]                                # heads fused: hD_k(v)
    gi_m = pv[:, 2 * KH:2 * KH + 3 * H]                   # GRU_m input gates (128-aligned)
    vE = pv[:, 2 * KH + 3 * H:2 * KH + 4 * H]             # v @ wE[v-part] + bE

    d_sup = jnp.tanh(ps[:, 0:KH])                         # heads fused: tanh(hB_k(s))
    s2s = jnp.tanh(ps[:, KH:KH + H])                      # tanh(A(s))
    s2m = jnp.tanh(ps[:, KH + H:KH + 2 * H])              # tanh(C(s))
    gi_s = ps[:, KH + 2 * H:KH + 5 * H]                   # GRU_s input gates (128-aligned)

    # ---- Stage 2: per-graph attention pooling (all heads in one pass) -----
    d_sup_n = mm(seg, d_sup)                              # broadcast_nodes -> [N, KH]
    logits = mm(d_node * d_sup_n, pm_w(o["hc"], KP, rows=KH)) + pm_b(o["hc"], KP)   # [N, KP]
    # dgl.softmax_nodes == per-graph softmax over nodes; softmax is invariant to any
    # per-graph constant shift, so shift by the per-graph MEAN (same segT/seg matmul
    # pattern as the denominator).  Robust even if one graph's logits sit far below
    # another's; approx reciprocal is fine because the shift cancels exactly.
    cnt_g = jnp.sum(segT, axis=1, keepdims=True)          # [G, 1] nodes per graph
    mean_g = mm(segT, logits) * pl.reciprocal(cnt_g, approx=True)
    ex = jnp.exp(logits - mm(seg, mean_g))                # [N, KP]
    denom_n = mm(seg, mm(segT, ex))                       # per-graph sums broadcast back
    a_soft = ex / denom_n                                 # [N, KP]

    # replicate head-k attention column across head-k's H message lanes (repmat is
    # a precomputed [KP, KH] constant packed in PM; no in-kernel iota/compare).
    hmsg = hDv * mm(a_soft, pm_w(o["rep"], KH, rows=KP))  # [N, KH]
    m2s = jnp.tanh(mm(mm(segT, hmsg), pm_w(o["wb"], H, rows=KH))
                   + pm_b(o["wb"], H))                    # tanh(B(sum_nodes)) -> [G, H]

    # ---- Stage 3: graph message passing ------------------------------------
    sve = mm(adj, _leaky_relu(v))                         # sum_{src->dst} leaky_relu(v_src)
    m2m = _leaky_relu(mm(sve, pm_w(o["we"], H)) + vE)     # leaky_relu(E([sve|v])), no concat

    # ---- Stage 4: gated GRU updates -----------------------------------------
    s2m_n = mm(seg, s2m)                                  # broadcast_nodes -> [N, H]

    # node update: GateUpdate(m2m, s2m_n, v)  (split matmuls, no [N,2H] concat)
    z_m = jax.nn.sigmoid(mm(m2m, pm_w(o["gmA"], H)) + mm(s2m_n, pm_w(o["gmB"], H))
                         + pm_b(o["gmA"], H))
    h_m = z_m * s2m_n + (1.0 - z_m) * m2m
    gh_m = mm(h_m, pm_w(o["ghm"], 3 * H)) + pm_b(o["ghm"], 3 * H)
    vv = _gru_combine(gi_m, gh_m, h_m, H)

    # super-node update: GateUpdate(s2s, m2s, s)
    z_s = jax.nn.sigmoid(mm(s2s, pm_w(o["gsA"], H)) + mm(m2s, pm_w(o["gsB"], H))
                         + pm_b(o["gsA"], H))
    h_s = z_s * m2s + (1.0 - z_s) * s2s
    gh_s = mm(h_s, pm_w(o["ghs"], 3 * H)) + pm_b(o["ghs"], 3 * H)
    ss = _gru_combine(gi_s, gh_s, h_s, H)

    # single combined output: rows [0, N) = vv, rows [N, N+G) = ss  (one writeback DMA)
    # (N is a multiple of 8 here so the second store stays sublane-aligned)
    out_ref[:N, :] = vv
    out_ref[N:, :] = ss


# ---------------------------------------------------------------------------
# Host-side parameter packing into three slabs (runs ONCE, not per call)
# ---------------------------------------------------------------------------
def pack_params(p, v_dim, h_dim, k_head):
    """Pack the 32 SConvr1 parameter tensors into three VMEM slabs.

    PV [D+1,  2KH+4H] : [hA | hD | GRU_m W_ih | wE_v]  (+ bias row); gate slab 128-aligned
    PS [D+1,  KH+5H]  : [hB | wA | wC | GRU_s W_ih]    (+ bias row); gate slab 128-aligned
    PM [KH+1, KH+KP+12H] : [repmat | hC block-diag | wB | gmA | gmB | gsA | gsB |
                            wE_sve | GRU_m W_hh | GRU_s W_hh]  (+ bias row)
    Generic in k_head (KH weight rows + 1 bias row).
    """
    D, H, K = v_dim, h_dim, k_head
    KH, KP = K * H, H
    f32 = jnp.float32
    cat = lambda xs, ax: jnp.concatenate(xs, axis=ax)

    hA = cat([p["hA"][k] for k in range(K)], 1)
    hbA = cat([p["hbA"][k] for k in range(K)], 1)
    hB = cat([p["hB"][k] for k in range(K)], 1)
    hbB = cat([p["hbB"][k] for k in range(K)], 1)
    hD = cat([p["hD"][k] for k in range(K)], 1)
    hbD = cat([p["hbD"][k] for k in range(K)], 1)
    wE_sve, wE_v = p["wE"][:H, :], p["wE"][H:, :]

    PV = cat([cat([hA, hD, p["gm_wih"], wE_v], 1),
              cat([hbA, hbD, p["gm_bih"], p["bE"]], 1)], 0)          # [D+1, 2KH+4H]
    PS = cat([cat([hB, p["wA"], p["wC"], p["gs_wih"]], 1),
              cat([hbB, p["bA"], p["bC"], p["gs_bih"]], 1)], 0)      # [D+1, KH+5H]

    # head-replication matrix [KP, KH]: column c picks attention column c // H
    row = jnp.arange(KP)[:, None]
    col = jnp.arange(KH)[None, :]
    repmat = (row == col // H).astype(f32)

    # block-diagonal per-head attention matrix, lane-padded from K to KP columns
    hC_bd = jnp.zeros((KH, KP), f32)
    hbC_r = jnp.zeros((1, KP), f32)
    for k in range(K):
        hC_bd = hC_bd.at[k * H:(k + 1) * H, k].set(p["hC"][k][:, 0])
        hbC_r = hbC_r.at[0, k].set(p["hbC"][k][0, 0])

    def padKH(w):  # zero-pad a weight block to KH rows
        if w.shape[0] < KH:
            return cat([w, jnp.zeros((KH - w.shape[0], w.shape[1]), f32)], 0)
        return w

    zH = jnp.zeros((1, H), f32)
    W = cat([padKH(repmat), hC_bd, p["wB"],
             padKH(p["gmA"]), padKH(p["gmB"]), padKH(p["gsA"]), padKH(p["gsB"]),
             padKH(wE_sve), padKH(p["gm_whh"]), padKH(p["gs_whh"])], 1)
    b = cat([jnp.zeros((1, KH), f32), hbC_r, p["bB"],
             p["gmbA"] + p["gmbB"], zH, p["gsbA"] + p["gsbB"], zH,
             zH, p["gm_bhh"], p["gs_bhh"]], 1)
    PM = cat([W, b], 0)                                              # [KH+1, KH+KP+12H]
    assert PM.shape[1] == _pm_offsets(H, K)["end"]
    return PV, PS, PM


def make_sconvr1(params):
    """Pack parameters once and return a jitted forward(v, s, adj, seg) closure."""
    D = params["wA"].shape[0]
    H = params["bA"].shape[1]
    K = params["hA"].shape[0]
    assert D == H, "SConvr1 requires v_dim == h_dim (cat(sve, v) feeds E; GRU consumes v/s)."
    KH, KP = K * H, H

    # packed ONCE; the jitted forward closes over these device-resident constants,
    # so per-call there is no host-side concat glue and the 3 weight slabs stay on device.
    PV, PS, PM = pack_params(params, D, H, K)

    @jax.jit
    def forward(v, s, adj, seg):
        N = v.shape[0]
        G = s.shape[0]
        segT = jnp.transpose(seg)

        # advisory cost estimate so XLA schedules neighbouring ops around this small call
        mms = [(N, D, 2 * KH + 4 * H), (G, D, KH + 5 * H),
               (N, G, KH), (N, KH, KP), (G, N, KP), (N, G, KP), (G, N, KP), (N, G, KP),
               (N, KP, KH), (G, N, KH), (G, KH, H),
               (N, N, D), (N, H, H), (N, G, H),
               (N, H, H), (N, H, H), (N, H, 3 * H),
               (G, H, H), (G, H, H), (G, H, 3 * H)]
        flops = int(sum(2 * a * b * c for a, b, c in mms))
        transcendentals = int(N * (KH + KP + 6 * H) + G * (KH + 10 * H))
        bytes_accessed = int(4 * (v.size + s.size + adj.size + 2 * seg.size
                                  + PV.size + PS.size + PM.size + (N + G) * H))

        vmem = pl.BlockSpec(memory_space=pltpu.MemorySpace.VMEM)
        out = pl.pallas_call(
            functools.partial(_sconvr1_kernel, N=N, G=G, D=D, H=H, K=K),
            out_shape=jax.ShapeDtypeStruct((N + G, H), jnp.float32),
            in_specs=[vmem] * 8,
            out_specs=vmem,
            compiler_params=pltpu.CompilerParams(vmem_limit_bytes=32 * 1024 * 1024),
            cost_estimate=pl.CostEstimate(flops=flops, transcendentals=transcendentals,
                                          bytes_accessed=bytes_accessed),
        )(v, s, adj, seg, segT, PV, PS, PM)
        return out[:N], out[N:]

    return forward


# ---------------------------------------------------------------------------
# Pure-JAX reference (direct transcription of the PyTorch module semantics)
# ---------------------------------------------------------------------------
def _linear(x, w, b):
    return jnp.dot(x, w, preferred_element_type=jnp.float32) + b


def _gru_cell(x, h, w_ih, w_hh, b_ih, b_hh, hdim):
    gi = jnp.dot(x, w_ih, preferred_element_type=jnp.float32) + b_ih
    gh = jnp.dot(h, w_hh, preferred_element_type=jnp.float32) + b_hh
    return _gru_combine(gi, gh, h, hdim)


def _gate_update(a, b, c, wA, bA, wB, bB, w_ih, w_hh, b_ih, b_hh, hdim):
    z = jax.nn.sigmoid(_linear(a, wA, bA) + _linear(b, wB, bB))
    h = z * b + (1.0 - z) * a
    return _gru_cell(c, h, w_ih, w_hh, b_ih, b_hh, hdim)


def reference_forward(v, s, adj, seg, p):
    segT = jnp.transpose(seg)
    N = v.shape[0]
    H = p["bA"].shape[1]
    k_head = p["hA"].shape[0]

    s2s = jnp.tanh(_linear(s, p["wA"], p["bA"]))
    m2s_parts = []
    for kh in range(k_head):
        d_node = jnp.tanh(_linear(v, p["hA"][kh], p["hbA"][kh]))
        d_super = jnp.tanh(_linear(s, p["hB"][kh], p["hbB"][kh]))
        d_super_n = jnp.dot(seg, d_super, preferred_element_type=jnp.float32)
        a = _linear(d_node * d_super_n, p["hC"][kh], p["hbC"][kh])
        a_row = jnp.reshape(a, (1, N))
        masked = jnp.where(segT > 0.5, a_row, -1e30)
        a_max = jnp.max(masked, axis=1, keepdims=True)
        a_max_n = jnp.dot(seg, a_max, preferred_element_type=jnp.float32)
        ex = jnp.exp(a - a_max_n)
        denom = jnp.dot(segT, ex, preferred_element_type=jnp.float32)
        denom_n = jnp.dot(seg, denom, preferred_element_type=jnp.float32)
        a_soft = ex / denom_n
        hmsg = _linear(v, p["hD"][kh], p["hbD"][kh]) * a_soft
        m2s_parts.append(jnp.dot(segT, hmsg, preferred_element_type=jnp.float32))
    m2s = jnp.tanh(_linear(jnp.concatenate(m2s_parts, axis=1), p["wB"], p["bB"]))

    s2m = jnp.tanh(_linear(s, p["wC"], p["bC"]))
    s2m_n = jnp.dot(seg, s2m, preferred_element_type=jnp.float32)

    sve = jnp.dot(adj, _leaky_relu(v), preferred_element_type=jnp.float32)
    svev = jnp.concatenate([sve, v], axis=1)
    m2m = _leaky_relu(_linear(svev, p["wE"], p["bE"]))

    vv = _gate_update(m2m, s2m_n, v, p["gmA"], p["gmbA"], p["gmB"], p["gmbB"],
                      p["gm_wih"], p["gm_whh"], p["gm_bih"], p["gm_bhh"], H)
    ss = _gate_update(s2s, m2s, s, p["gsA"], p["gsbA"], p["gsB"], p["gsbB"],
                      p["gs_wih"], p["gs_whh"], p["gs_bih"], p["gs_bhh"], H)
    return vv, ss


# ---------------------------------------------------------------------------
# Deterministic parameter init (synthetic; matches the nn.Module's shapes)
# ---------------------------------------------------------------------------
def init_params(key, v_dim, e_dim, h_dim, k_head):
    keys = iter(jax.random.split(key, 64))

    def lin(in_d, out_d):
        w = jax.random.normal(next(keys), (in_d, out_d), jnp.float32) / jnp.sqrt(float(in_d))
        b = 0.1 * jax.random.normal(next(keys), (1, out_d), jnp.float32)
        return w, b

    p = {}
    p["wA"], p["bA"] = lin(v_dim, h_dim)
    p["wB"], p["bB"] = lin(h_dim * k_head, h_dim)
    p["wC"], p["bC"] = lin(v_dim, h_dim)
    # TODO(synk): self.D = Linear(e_dim + v_dim, h_dim) is defined in __init__ but never
    # used in the reference forward, so it is not materialized here.
    p["wE"], p["bE"] = lin(h_dim + v_dim, h_dim)

    hA, hbA, hB, hbB, hC, hbC, hD, hbD = ([] for _ in range(8))
    for _ in range(k_head):
        w, b = lin(v_dim, h_dim); hA.append(w); hbA.append(b)
        w, b = lin(v_dim, h_dim); hB.append(w); hbB.append(b)
        w, b = lin(h_dim, 1);     hC.append(w); hbC.append(b)
        w, b = lin(v_dim, h_dim); hD.append(w); hbD.append(b)
    p["hA"], p["hbA"] = jnp.stack(hA), jnp.stack(hbA)
    p["hB"], p["hbB"] = jnp.stack(hB), jnp.stack(hbB)
    p["hC"], p["hbC"] = jnp.stack(hC), jnp.stack(hbC)
    p["hD"], p["hbD"] = jnp.stack(hD), jnp.stack(hbD)

    for tag in ("gm", "gs"):
        p[tag + "A"], p[tag + "bA"] = lin(h_dim, h_dim)
        p[tag + "B"], p[tag + "bB"] = lin(h_dim, h_dim)
        p[tag + "_wih"], p[tag + "_bih"] = lin(h_dim, 3 * h_dim)
        p[tag + "_whh"], p[tag + "_bhh"] = lin(h_dim, 3 * h_dim)
    return p


if __name__ == "__main__":
    # The reference module requires v_dim == h_dim (cat(sve, v) feeds E(h+v -> h),
    # and the GRUCell consumes v / s directly as h_dim inputs).
    v_dim = h_dim = 32
    e_dim = 16
    k_head = K_HEAD
    n_graphs, n_per = 2, 8
    N = n_graphs * n_per

    key = jax.random.PRNGKey(0)
    kp, kv, ks_, ke = jax.random.split(key, 4)
    params = init_params(kp, v_dim, e_dim, h_dim, k_head)

    v = jax.random.normal(kv, (N, v_dim), jnp.float32)          # node features
    s = jax.random.normal(ks_, (n_graphs, v_dim), jnp.float32)  # super-node features

    # Batched graph: a bidirectional ring within each of the 2 graphs.
    src, dst = [], []
    for g in range(n_graphs):
        base = g * n_per
        for i in range(n_per):
            src += [base + i, base + (i + 1) % n_per]
            dst += [base + (i + 1) % n_per, base + i]
    E = len(src)
    adj = jnp.zeros((N, N), jnp.float32).at[jnp.array(dst), jnp.array(src)].add(1.0)
    seg = jnp.zeros((N, n_graphs), jnp.float32).at[
        jnp.arange(N), jnp.repeat(jnp.arange(n_graphs), n_per)].set(1.0)

    # TODO(synk): edge features `e` are fetched in __msg_func but never used by the
    # message, so they do not enter the kernel (kept only for interface parity).
    e = jax.random.normal(ke, (E, e_dim), jnp.float32)

    sconvr1 = make_sconvr1(params)          # packs weight slabs once, jits the wrapper
    vv, ss = sconvr1(v, s, adj, seg)
    jax.block_until_ready((vv, ss))

    # Sanity-check the fused Pallas lowering against a direct pure-JAX transcription.
    vv_ref, ss_ref = reference_forward(v, s, adj, seg, params)
    assert vv.shape == (N, h_dim) and ss.shape == (n_graphs, h_dim)
    assert jnp.allclose(vv, vv_ref, rtol=1e-3, atol=1e-3)
    assert jnp.allclose(ss, ss_ref, rtol=1e-3, atol=1e-3)

    print("KERNEL_OK")
</pallas_src>

<mosaic_0001>
module attributes {stable_mosaic.version = 11 : i64} {
  func.func @_sconvr1_kernel(%arg0: memref<16x32xf32, #tpu.memory_space<vmem>>, %arg1: memref<2x32xf32, #tpu.memory_space<vmem>>, %arg2: memref<16x16xf32, #tpu.memory_space<vmem>>, %arg3: memref<16x2xf32, #tpu.memory_space<vmem>>, %arg4: memref<2x16xf32, #tpu.memory_space<vmem>>, %arg5: memref<33x256xf32, #tpu.memory_space<vmem>>, %arg6: memref<33x224xf32, #tpu.memory_space<vmem>>, %arg7: memref<65x480xf32, #tpu.memory_space<vmem>>, %arg8: memref<18x32xf32, #tpu.memory_space<vmem>>) attributes {dimension_semantics = [], scalar_prefetch = 0 : i64, scratch_operands = 0 : i64, tpu.core_type = #tpu.core_type<tc>} {
    %c0 = arith.constant 0 : index
    %c0_0 = arith.constant 0 : index
    %0 = vector.load %arg0[%c0, %c0_0] : memref<16x32xf32, #tpu.memory_space<vmem>>, vector<16x32xf32>
    %c0_1 = arith.constant 0 : index
    %c0_2 = arith.constant 0 : index
    %1 = vector.load %arg1[%c0_1, %c0_2] : memref<2x32xf32, #tpu.memory_space<vmem>>, vector<2x32xf32>
    %c0_3 = arith.constant 0 : index
    %c0_4 = arith.constant 0 : index
    %2 = vector.load %arg2[%c0_3, %c0_4] : memref<16x16xf32, #tpu.memory_space<vmem>>, vector<16x16xf32>
    %c0_5 = arith.constant 0 : index
    %c0_6 = arith.constant 0 : index
    %3 = vector.load %arg3[%c0_5, %c0_6] : memref<16x2xf32, #tpu.memory_space<vmem>>, vector<16x2xf32>
    %c0_7 = arith.constant 0 : index
    %c0_8 = arith.constant 0 : index
    %4 = vector.load %arg4[%c0_7, %c0_8] : memref<2x16xf32, #tpu.memory_space<vmem>>, vector<2x16xf32>
    %c0_9 = arith.constant 0 : index
    %c0_10 = arith.constant 0 : index
    %5 = vector.load %arg5[%c0_9, %c0_10] : memref<33x256xf32, #tpu.memory_space<vmem>>, vector<32x256xf32>
    %cst = arith.constant dense<0.000000e+00> : vector<16x256xf32>
    %6 = tpu.matmul %0, %5, %cst {dimension_numbers = #tpu.dot_dimension_numbers<[1], [0], [0], [1], [0, 0, 1, 1], [], []>} : vector<16x32xf32>, vector<32x256xf32>, vector<16x256xf32> -> vector<16x256xf32>
    %c32 = arith.constant 32 : index
    %c0_11 = arith.constant 0 : index
    %7 = vector.load %arg5[%c32, %c0_11] : memref<33x256xf32, #tpu.memory_space<vmem>>, vector<1x256xf32>
    %8 = vector.broadcast %7 : vector<1x256xf32> to vector<16x256xf32>
    %9 = arith.addf %6, %8 : vector<16x256xf32>
    %c0_12 = arith.constant 0 : index
    %c0_13 = arith.constant 0 : index
    %10 = vector.load %arg6[%c0_12, %c0_13] : memref<33x224xf32, #tpu.memory_space<vmem>>, vector<32x224xf32>
    %cst_14 = arith.constant dense<0.000000e+00> : vector<2x224xf32>
    %11 = tpu.matmul %1, %10, %cst_14 {dimension_numbers = #tpu.dot_dimension_numbers<[1], [0], [0], [1], [0, 0, 1, 1], [], []>} : vector<2x32xf32>, vector<32x224xf32>, vector<2x224xf32> -> vector<2x224xf32>
    %c32_15 = arith.constant 32 : index
    %c0_16 = arith.constant 0 : index
    %12 = vector.load %arg6[%c32_15, %c0_16] : memref<33x224xf32, #tpu.memory_space<vmem>>, vector<1x224xf32>
    %13 = vector.broadcast %12 : vector<1x224xf32> to vector<2x224xf32>
    %14 = arith.addf %11, %13 : vector<2x224xf32>
    %15 = vector.extract_strided_slice %9 {offsets = [0, 0], sizes = [16, 64], strides = [1, 1]} : vector<16x256xf32> to vector<16x64xf32>
    %16 = math.tanh %15 : vector<16x64xf32>
    %17 = vector.extract_strided_slice %9 {offsets = [0, 64], sizes = [16, 64], strides = [1, 1]} : vector<16x256xf32> to vector<16x64xf32>
    %18 = vector.extract_strided_slice %9 {offsets = [0, 128], sizes = [16, 96], strides = [1, 1]} : vector<16x256xf32> to vector<16x96xf32>
    %19 = vector.extract_strided_slice %9 {offsets = [0, 224], sizes = [16, 32], strides = [1, 1]} : vector<16x256xf32> to vector<16x32xf32>
    %20 = vector.extract_strided_slice %14 {offsets = [0, 0], sizes = [2, 64], strides = [1, 1]} : vector<2x224xf32> to vector<2x64xf32>
    %21 = math.tanh %20 : vector<2x64xf32>
    %22 = vector.extract_strided_slice %14 {offsets = [0, 64], sizes = [2, 32], strides = [1, 1]} : vector<2x224xf32> to vector<2x32xf32>
    %23 = math.tanh %22 : vector<2x32xf32>
    %24 = vector.extract_strided_slice %14 {offsets = [0, 96], sizes = [2, 32], strides = [1, 1]} : vector<2x224xf32> to vector<2x32xf32>
    %25 = math.tanh %24 : vector<2x32xf32>
    %26 = vector.extract_strided_slice %14 {offsets = [0, 128], sizes = [2, 96], strides = [1, 1]} : vector<2x224xf32> to vector<2x96xf32>
    %cst_17 = arith.constant dense<0.000000e+00> : vector<16x64xf32>
    %27 = tpu.matmul %3, %21, %cst_17 {dimension_numbers = #tpu.dot_dimension_numbers<[1], [0], [0], [1], [0, 0, 1, 1], [], []>} : vector<16x2xf32>, vector<2x64xf32>, vector<16x64xf32> -> vector<16x64xf32>
    %28 = arith.mulf %16, %27 : vector<16x64xf32>
    %c0_18 = arith.constant 0 : index
    %c64 = arith.constant 64 : index
    %29 = vector.load %arg7[%c0_18, %c64] : memref<65x480xf32, #tpu.memory_space<vmem>>, vector<64x32xf32>
    %cst_19 = arith.constant dense<0.000000e+00> : vector<16x32xf32>
    %30 = tpu.matmul %28, %29, %cst_19 {dimension_numbers = #tpu.dot_dimension_numbers<[1], [0], [0], [1], [0, 0, 1, 1], [], []>} : vector<16x64xf32>, vector<64x32xf32>, vector<16x32xf32> -> vector<16x32xf32>
    %c64_20 = arith.constant 64 : index
    %c64_21 = arith.constant 64 : index
    %31 = vector.load %arg7[%c64_20, %c64_21] : memref<65x480xf32, #tpu.memory_space<vmem>>, vector<1x32xf32>
    %32 = vector.broadcast %31 : vector<1x32xf32> to vector<16x32xf32>
    %33 = arith.addf %30, %32 : vector<16x32xf32>
    %cst_22 = arith.constant dense<0.000000e+00> : vector<2xf32>
    %34 = vector.multi_reduction <add>, %4, %cst_22 [1] : vector<2x16xf32> to vector<2xf32>
    %35 = vector.shape_cast %34 : vector<2xf32> to vector<2x1xf32>
    %cst_23 = arith.constant dense<0.000000e+00> : vector<2x32xf32>
    %36 = tpu.matmul %4, %33, %cst_23 {dimension_numbers = #tpu.dot_dimension_numbers<[1], [0], [0], [1], [0, 0, 1, 1], [], []>} : vector<2x16xf32>, vector<16x32xf32>, vector<2x32xf32> -> vector<2x32xf32>
    %37 = tpu.reciprocal %35 {approx = true} : vector<2x1xf32> -> vector<2x1xf32>
    %38 = vector.broadcast %37 : vector<2x1xf32> to vector<2x32xf32>
    %39 = arith.mulf %36, %38 : vector<2x32xf32>
    %cst_24 = arith.constant dense<0.000000e+00> : vector<16x32xf32>
    %40 = tpu.matmul %3, %39, %cst_24 {dimension_numbers = #tpu.dot_dimension_numbers<[1], [0], [0], [1], [0, 0, 1, 1], [], []>} : vector<16x2xf32>, vector<2x32xf32>, vector<16x32xf32> -> vector<16x32xf32>
    %41 = arith.subf %33, %40 : vector<16x32xf32>
    %42 = math.exp %41 : vector<16x32xf32>
    %cst_25 = arith.constant dense<0.000000e+00> : vector<2x32xf32>
    %43 = tpu.matmul %4, %42, %cst_25 {dimension_numbers = #tpu.dot_dimension_numbers<[1], [0], [0], [1], [0, 0, 1, 1], [], []>} : vector<2x16xf32>, vector<16x32xf32>, vector<2x32xf32> -> vector<2x32xf32>
    %cst_26 = arith.constant dense<0.000000e+00> : vector<16x32xf32>
    %44 = tpu.matmul %3, %43, %cst_26 {dimension_numbers = #tpu.dot_dimension_numbers<[1], [0], [0], [1], [0, 0, 1, 1], [], []>} : vector<16x2xf32>, vector<2x32xf32>, vector<16x32xf32> -> vector<16x32xf32>
    %45 = arith.divf %42, %44 : vector<16x32xf32>
    %c0_27 = arith.constant 0 : index
    %c0_28 = arith.constant 0 : index
    %46 = vector.load %arg7[%c0_27, %c0_28] : memref<65x480xf32, #tpu.memory_space<vmem>>, vector<32x64xf32>
    %cst_29 = arith.constant dense<0.000000e+00> : vector<16x64xf32>
    %47 = tpu.matmul %45, %46, %cst_29 {dimension_numbers = #tpu.dot_dimension_numbers<[1], [0], [0], [1], [0, 0, 1, 1], [], []>} : vector<16x32xf32>, vector<32x64xf32>, vector<16x64xf32> -> vector<16x64xf32>
    %48 = arith.mulf %17, %47 : vector<16x64xf32>
    %cst_30 = arith.constant dense<0.000000e+00> : vector<2x64xf32>
    %49 = tpu.matmul %4, %48, %cst_30 {dimension_numbers = #tpu.dot_dimension_numbers<[1], [0], [0], [1], [0, 0, 1, 1], [], []>} : vector<2x16xf32>, vector<16x64xf32>, vector<2x64xf32> -> vector<2x64xf32>
    %c0_31 = arith.constant 0 : index
    %c96 = arith.constant 96 : index
    %50 = vector.load %arg7[%c0_31, %c96] : memref<65x480xf32, #tpu.memory_space<vmem>>, vector<64x32xf32>
    %cst_32 = arith.constant dense<0.000000e+00> : vector<2x32xf32>
    %51 = tpu.matmul %49, %50, %cst_32 {dimension_numbers = #tpu.dot_dimension_numbers<[1], [0], [0], [1], [0, 0, 1, 1], [], []>} : vector<2x64xf32>, vector<64x32xf32>, vector<2x32xf32> -> vector<2x32xf32>
    %c64_33 = arith.constant 64 : index
    %c96_34 = arith.constant 96 : index
    %52 = vector.load %arg7[%c64_33, %c96_34] : memref<65x480xf32, #tpu.memory_space<vmem>>, vector<1x32xf32>
    %53 = vector.broadcast %52 : vector<1x32xf32> to vector<2x32xf32>
    %54 = arith.addf %51, %53 : vector<2x32xf32>
    %55 = math.tanh %54 : vector<2x32xf32>
    %cst_35 = arith.constant 0.000000e+00 : f32
    %56 = vector.broadcast %cst_35 : f32 to vector<16x32xf32>
    %57 = arith.cmpf oge, %0, %56 : vector<16x32xf32>
    %cst_36 = arith.constant 1.000000e-01 : f32
    %58 = vector.broadcast %cst_36 : f32 to vector<16x32xf32>
    %59 = arith.mulf %58, %0 : vector<16x32xf32>
    %60 = arith.select %57, %0, %59 : vector<16x32xi1>, vector<16x32xf32>
    %cst_37 = arith.constant dense<0.000000e+00> : vector<16x32xf32>
    %61 = tpu.matmul %2, %60, %cst_37 {dimension_numbers = #tpu.dot_dimension_numbers<[1], [0], [0], [1], [0, 0, 1, 1], [], []>} : vector<16x16xf32>, vector<16x32xf32>, vector<16x32xf32> -> vector<16x32xf32>
    %c0_38 = arith.constant 0 : index
    %c256 = arith.constant 256 : index
    %62 = vector.load %arg7[%c0_38, %c256] : memref<65x480xf32, #tpu.memory_space<vmem>>, vector<32x32xf32>
    %cst_39 = arith.constant dense<0.000000e+00> : vector<16x32xf32>
    %63 = tpu.matmul %61, %62, %cst_39 {dimension_numbers = #tpu.dot_dimension_numbers<[1], [0], [0], [1], [0, 0, 1, 1], [], []>} : vector<16x32xf32>, vector<32x32xf32>, vector<16x32xf32> -> vector<16x32xf32>
    %64 = arith.addf %63, %19 : vector<16x32xf32>
    %cst_40 = arith.constant 0.000000e+00 : f32
    %65 = vector.broadcast %cst_40 : f32 to vector<16x32xf32>
    %66 = arith.cmpf oge, %64, %65 : vector<16x32xf32>
    %cst_41 = arith.constant 1.000000e-01 : f32
    %67 = vector.broadcast %cst_41 : f32 to vector<16x32xf32>
    %68 = arith.mulf %67, %64 : vector<16x32xf32>
    %69 = arith.select %66, %64, %68 : vector<16x32xi1>, vector<16x32xf32>
    %cst_42 = arith.constant dense<0.000000e+00> : vector<16x32xf32>
    %70 = tpu.matmul %3, %25, %cst_42 {dimension_numbers = #tpu.dot_dimension_numbers<[1], [0], [0], [1], [0, 0, 1, 1], [], []>} : vector<16x2xf32>, vector<2x32xf32>, vector<16x32xf32> -> vector<16x32xf32>
    %c0_43 = arith.constant 0 : index
    %c128 = arith.constant 128 : index
    %71 = vector.load %arg7[%c0_43, %c128] : memref<65x480xf32, #tpu.memory_space<vmem>>, vector<32x32xf32>
    %cst_44 = arith.constant dense<0.000000e+00> : vector<16x32xf32>
    %72 = tpu.matmul %69, %71, %cst_44 {dimension_numbers = #tpu.dot_dimension_numbers<[1], [0], [0], [1], [0, 0, 1, 1], [], []>} : vector<16x32xf32>, vector<32x32xf32>, vector<16x32xf32> -> vector<16x32xf32>
    %c0_45 = arith.constant 0 : index
    %c160 = arith.constant 160 : index
    %73 = vector.load %arg7[%c0_45, %c160] : memref<65x480xf32, #tpu.memory_space<vmem>>, vector<32x32xf32>
    %cst_46 = arith.constant dense<0.000000e+00> : vector<16x32xf32>
    %74 = tpu.matmul %70, %73, %cst_46 {dimension_numbers = #tpu.dot_dimension_numbers<[1], [0], [0], [1], [0, 0, 1, 1], [], []>} : vector<16x32xf32>, vector<32x32xf32>, vector<16x32xf32> -> vector<16x32xf32>
    %75 = arith.addf %72, %74 : vector<16x32xf32>
    %c64_47 = arith.constant 64 : index
    %c128_48 = arith.constant 128 : index
    %76 = vector.load %arg7[%c64_47, %c128_48] : memref<65x480xf32, #tpu.memory_space<vmem>>, vector<1x32xf32>
    %77 = vector.broadcast %76 : vector<1x32xf32> to vector<16x32xf32>
    %78 = arith.addf %75, %77 : vector<16x32xf32>
    %79 = arith.negf %78 : vector<16x32xf32>
    %80 = math.exp %79 : vector<16x32xf32>
    %cst_49 = arith.constant 1.000000e+00 : f32
    %81 = vector.broadcast %cst_49 : f32 to vector<16x32xf32>
    %82 = arith.addf %81, %80 : vector<16x32xf32>
    %83 = arith.divf %81, %82 : vector<16x32xf32>
    %84 = arith.mulf %83, %70 : vector<16x32xf32>
    %cst_50 = arith.constant 1.000000e+00 : f32
    %85 = vector.broadcast %cst_50 : f32 to vector<16x32xf32>
    %86 = arith.subf %85, %83 : vector<16x32xf32>
    %87 = arith.mulf %86, %69 : vector<16x32xf32>
    %88 = arith.addf %84, %87 : vector<16x32xf32>
    %c0_51 = arith.constant 0 : index
    %c288 = arith.constant 288 : index
    %89 = vector.load %arg7[%c0_51, %c288] : memref<65x480xf32, #tpu.memory_space<vmem>>, vector<32x96xf32>
    %cst_52 = arith.constant dense<0.000000e+00> : vector<16x96xf32>
    %90 = tpu.matmul %88, %89, %cst_52 {dimension_numbers = #tpu.dot_dimension_numbers<[1], [0], [0], [1], [0, 0, 1, 1], [], []>} : vector<16x32xf32>, vector<32x96xf32>, vector<16x96xf32> -> vector<16x96xf32>
    %c64_53 = arith.constant 64 : index
    %c288_54 = arith.constant 288 : index
    %91 = vector.load %arg7[%c64_53, %c288_54] : memref<65x480xf32, #tpu.memory_space<vmem>>, vector<1x96xf32>
    %92 = vector.broadcast %91 : vector<1x96xf32> to vector<16x96xf32>
    %93 = arith.addf %90, %92 : vector<16x96xf32>
    %94 = vector.extract_strided_slice %18 {offsets = [0, 0], sizes = [16, 32], strides = [1, 1]} : vector<16x96xf32> to vector<16x32xf32>
    %95 = vector.extract_strided_slice %93 {offsets = [0, 0], sizes = [16, 32], strides = [1, 1]} : vector<16x96xf32> to vector<16x32xf32>
    %96 = arith.addf %94, %95 : vector<16x32xf32>
    %97 = arith.negf %96 : vector<16x32xf32>
    %98 = math.exp %97 : vector<16x32xf32>
    %cst_55 = arith.constant 1.000000e+00 : f32
    %99 = vector.broadcast %cst_55 : f32 to vector<16x32xf32>
    %100 = arith.addf %99, %98 : vector<16x32xf32>
    %101 = arith.divf %99, %100 : vector<16x32xf32>
    %102 = vector.extract_strided_slice %18 {offsets = [0, 32], sizes = [16, 32], strides = [1, 1]} : vector<16x96xf32> to vector<16x32xf32>
    %103 = vector.extract_strided_slice %93 {offsets = [0, 32], sizes = [16, 32], strides = [1, 1]} : vector<16x96xf32> to vector<16x32xf32>
    %104 = arith.addf %102, %103 : vector<16x32xf32>
    %105 = arith.negf %104 : vector<16x32xf32>
    %106 = math.exp %105 : vector<16x32xf32>
    %cst_56 = arith.constant 1.000000e+00 : f32
    %107 = vector.broadcast %cst_56 : f32 to vector<16x32xf32>
    %108 = arith.addf %107, %106 : vector<16x32xf32>
    %109 = arith.divf %107, %108 : vector<16x32xf32>
    %110 = vector.extract_strided_slice %18 {offsets = [0, 64], sizes = [16, 32], strides = [1, 1]} : vector<16x96xf32> to vector<16x32xf32>
    %111 = vector.extract_strided_slice %93 {offsets = [0, 64], sizes = [16, 32], strides = [1, 1]} : vector<16x96xf32> to vector<16x32xf32>
    %112 = arith.mulf %101, %111 : vector<16x32xf32>
    %113 = arith.addf %110, %112 : vector<16x32xf32>
    %114 = math.tanh %113 : vector<16x32xf32>
    %cst_57 = arith.constant 1.000000e+00 : f32
    %115 = vector.broadcast %cst_57 : f32 to vector<16x32xf32>
    %116 = arith.subf %115, %109 : vector<16x32xf32>
    %117 = arith.mulf %116, %114 : vector<16x32xf32>
    %118 = arith.mulf %109, %88 : vector<16x32xf32>
    %119 = arith.addf %117, %118 : vector<16x32xf32>
    %c0_58 = arith.constant 0 : index
    %c192 = arith.constant 192 : index
    %120 = vector.load %arg7[%c0_58, %c192] : memref<65x480xf32, #tpu.memory_space<vmem>>, vector<32x32xf32>
    %cst_59 = arith.constant dense<0.000000e+00> : vector<2x32xf32>
    %121 = tpu.matmul %23, %120, %cst_59 {dimension_numbers = #tpu.dot_dimension_numbers<[1], [0], [0], [1], [0, 0, 1, 1], [], []>} : vector<2x32xf32>, vector<32x32xf32>, vector<2x32xf32> -> vector<2x32xf32>
    %c0_60 = arith.constant 0 : index
    %c224 = arith.constant 224 : index
    %122 = vector.load %arg7[%c0_60, %c224] : memref<65x480xf32, #tpu.memory_space<vmem>>, vector<32x32xf32>
    %cst_61 = arith.constant dense<0.000000e+00> : vector<2x32xf32>
    %123 = tpu.matmul %55, %122, %cst_61 {dimension_numbers = #tpu.dot_dimension_numbers<[1], [0], [0], [1], [0, 0, 1, 1], [], []>} : vector<2x32xf32>, vector<32x32xf32>, vector<2x32xf32> -> vector<2x32xf32>
    %124 = arith.addf %121, %123 : vector<2x32xf32>
    %c64_62 = arith.constant 64 : index
    %c192_63 = arith.constant 192 : index
    %125 = vector.load %arg7[%c64_62, %c192_63] : memref<65x480xf32, #tpu.memory_space<vmem>>, vector<1x32xf32>
    %126 = vector.broadcast %125 : vector<1x32xf32> to vector<2x32xf32>
    %127 = arith.addf %124, %126 : vector<2x32xf32>
    %128 = arith.negf %127 : vector<2x32xf32>
    %129 = math.exp %128 : vector<2x32xf32>
    %cst_64 = arith.constant 1.000000e+00 : f32
    %130 = vector.broadcast %cst_64 : f32 to vector<2x32xf32>
    %131 = arith.addf %130, %129 : vector<2x32xf32>
    %132 = arith.divf %130, %131 : vector<2x32xf32>
    %133 = arith.mulf %132, %55 : vector<2x32xf32>
    %cst_65 = arith.constant 1.000000e+00 : f32
    %134 = vector.broadcast %cst_65 : f32 to vector<2x32xf32>
    %135 = arith.subf %134, %132 : vector<2x32xf32>
    %136 = arith.mulf %135, %23 : vector<2x32xf32>
    %137 = arith.addf %133, %136 : vector<2x32xf32>
    %c0_66 = arith.constant 0 : index
    %c384 = arith.constant 384 : index
    %138 = vector.load %arg7[%c0_66, %c384] : memref<65x480xf32, #tpu.memory_space<vmem>>, vector<32x96xf32>
    %cst_67 = arith.constant dense<0.000000e+00> : vector<2x96xf32>
    %139 = tpu.matmul %137, %138, %cst_67 {dimension_numbers = #tpu.dot_dimension_numbers<[1], [0], [0], [1], [0, 0, 1, 1], [], []>} : vector<2x32xf32>, vector<32x96xf32>, vector<2x96xf32> -> vector<2x96xf32>
    %c64_68 = arith.constant 64 : index
    %c384_69 = arith.constant 384 : index
    %140 = vector.load %arg7[%c64_68, %c384_69] : memref<65x480xf32, #tpu.memory_space<vmem>>, vector<1x96xf32>
    %141 = vector.broadcast %140 : vector<1x96xf32> to vector<2x96xf32>
    %142 = arith.addf %139, %141 : vector<2x96xf32>
    %143 = vector.extract_strided_slice %26 {offsets = [0, 0], sizes = [2, 32], strides = [1, 1]} : vector<2x96xf32> to vector<2x32xf32>
    %144 = vector.extract_strided_slice %142 {offsets = [0, 0], sizes = [2, 32], strides = [1, 1]} : vector<2x96xf32> to vector<2x32xf32>
    %145 = arith.addf %143, %144 : vector<2x32xf32>
    %146 = arith.negf %145 : vector<2x32xf32>
    %147 = math.exp %146 : vector<2x32xf32>
    %cst_70 = arith.constant 1.000000e+00 : f32
    %148 = vector.broadcast %cst_70 : f32 to vector<2x32xf32>
    %149 = arith.addf %148, %147 : vector<2x32xf32>
    %150 = arith.divf %148, %149 : vector<2x32xf32>
    %151 = vector.extract_strided_slice %26 {offsets = [0, 32], sizes = [2, 32], strides = [1, 1]} : vector<2x96xf32> to vector<2x32xf32>
    %152 = vector.extract_strided_slice %142 {offsets = [0, 32], sizes = [2, 32], strides = [1, 1]} : vector<2x96xf32> to vector<2x32xf32>
    %153 = arith.addf %151, %152 : vector<2x32xf32>
    %154 = arith.negf %153 : vector<2x32xf32>
    %155 = math.exp %154 : vector<2x32xf32>
    %cst_71 = arith.constant 1.000000e+00 : f32
    %156 = vector.broadcast %cst_71 : f32 to vector<2x32xf32>
    %157 = arith.addf %156, %155 : vector<2x32xf32>
    %158 = arith.divf %156, %157 : vector<2x32xf32>
    %159 = vector.extract_strided_slice %26 {offsets = [0, 64], sizes = [2, 32], strides = [1, 1]} : vector<2x96xf32> to vector<2x32xf32>
    %160 = vector.extract_strided_slice %142 {offsets = [0, 64], sizes = [2, 32], strides = [1, 1]} : vector<2x96xf32> to vector<2x32xf32>
    %161 = arith.mulf %150, %160 : vector<2x32xf32>
    %162 = arith.addf %159, %161 : vector<2x32xf32>
    %163 = math.tanh %162 : vector<2x32xf32>
    %cst_72 = arith.constant 1.000000e+00 : f32
    %164 = vector.broadcast %cst_72 : f32 to vector<2x32xf32>
    %165 = arith.subf %164, %158 : vector<2x32xf32>
    %166 = arith.mulf %165, %163 : vector<2x32xf32>
    %167 = arith.mulf %158, %137 : vector<2x32xf32>
    %168 = arith.addf %166, %167 : vector<2x32xf32>
    %c0_73 = arith.constant 0 : index
    %c0_74 = arith.constant 0 : index
    %169 = vector.load %arg8[%c0_73, %c0_74] : memref<18x32xf32, #tpu.memory_space<vmem>>, vector<16x32xf32>
    tpu.vector_store %arg8[%c0_73, %c0_74], %119 {strides = array<i32>} : memref<18x32xf32, #tpu.memory_space<vmem>>, vector<16x32xf32>,
    %c16 = arith.constant 16 : index
    %c0_75 = arith.constant 0 : index
    %170 = vector.load %arg8[%c16, %c0_75] : memref<18x32xf32, #tpu.memory_space<vmem>>, vector<2x32xf32>
    tpu.vector_store %arg8[%c16, %c0_75], %168 {strides = array<i32>} : memref<18x32xf32, #tpu.memory_space<vmem>>, vector<2x32xf32>,
    return
  }
}

</mosaic_0001>

<llo_original>
// kernel: forward.1
$region0: #{forward.1}
  #allocation0 [shape = 'u32[]', space=smem, size = 0x4, offset = 0x4, fixed_abs, tag = 'smem constant byte address 0x4 - core index']
  #allocation1 [shape = 'u32[144,128]{1,0:T(1,128)}', space=vmem, size = 0x12000, scoped, tag = 'internal scratch']
  %s0 = inlined_call_operand.vmem [shape: f32[16,32], index: 0, kind: input, shape index: {}]
  %s1 = inlined_call_operand.vmem [shape: f32[2,32], index: 1, kind: input, shape index: {}]
  %s2 = inlined_call_operand.hbm [shape: f32[16,16], index: 2, kind: input, shape index: {}]
  %s3 = inlined_call_operand.vmem [shape: f32[16,2], index: 3, kind: input, shape index: {}]
  %s4 = inlined_call_operand.vmem [shape: f32[2,16], index: 4, kind: input, shape index: {}]
  %s5 = inlined_call_operand.hbm [shape: f32[33,256], index: 5, kind: input, shape index: {}]
  %s6 = inlined_call_operand.hbm [shape: f32[33,224], index: 6, kind: input, shape index: {}]
  %s7 = inlined_call_operand.hbm [shape: f32[65,480], index: 7, kind: input, shape index: {}]
  %s8 = inlined_call_operand.vmem [shape: f32[18,32], index: 8, kind: output, shape index: {}]
  %s9 = sld [smem:[#allocation0]]
  $region58: #{forward.1} parent=0
    _
  %s11 = ssub.s32 1, %s9
  %s12 = scalar_select 0, %s11, %s9
  $region1: #{forward.1} parent=0
    #allocation2 [shape = 'u8[8192]{0}', space=vmem, size = 0x2000, scoped, tag = 'input window, operand 2, single buffered']
    #allocation3 [shape = 's32[1]{0}', space=sflag, size = 0x4, scoped, tag = 'scoped memory for forward.1']
    #allocation4 [shape = 'u8[40960]{0}', space=vmem, size = 0xa000, scoped, tag = 'input window, operand 5, single buffered']
    #allocation5 [shape = 's32[1]{0}', space=sflag, size = 0x4, scoped, tag = 'scoped memory for forward.1']
    #allocation6 [shape = 'u8[40960]{0}', space=vmem, size = 0xa000, scoped, tag = 'input window, operand 6, single buffered']
    #allocation7 [shape = 'u8[147456]{0}', space=vmem, size = 0x24000, scoped, tag = 'input window, operand 7, single buffered']
    #allocation8 [shape = 's32[1]{0}', space=sflag, size = 0x4, scoped, tag = 'scoped memory for forward.1']
    %13 = vsyncpa [#allocation3], 0
    %14 = vsyncpa [#allocation5], 0
    %15 = vsyncpa [#allocation8], 0
    // Predicated region
    $region2: #{forward.1} parent=1 // pred_check
      _
    $region3: #{forward.1} parent=1 // pred_check_branch
      %17 = sbr.rel (0) target = $region5
    $region4: #{forward.1} parent=1 // pred_region
      _
    $region5: #{forward.1} parent=1 // pred_fallthru
      _
    // Predicated region
    $region6: #{forward.1} parent=1 // pred_check
      _
    $region7: #{forward.1} parent=1 // pred_check_branch
      %19 = sbr.rel (0) target = $region9
    $region8: #{forward.1} parent=1 // pred_region
      _
    $region9: #{forward.1} parent=1 // pred_fallthru
      _
    // Predicated region
    $region10: #{forward.1} parent=1 // pred_check
      _
    $region11: #{forward.1} parent=1 // pred_check_branch
      %21 = sbr.rel (0) target = $region13
    $region12: #{forward.1} parent=1 // pred_region
      %s23 = ssub.s32 256, 256
      %24 = vsyncadd [#allocation3], %s23
      %s25 = sshll.u32 [#allocation2], 4
      %s26 = int_to_ptr.vmem [resolvable:$true] %s25
      %31 = dma.hbm_to_vmem [thread:$0]  %s2, 256, %s26, [#allocation3], 128, 128, 8
    $region13: #{forward.1} parent=1 // pred_fallthru
      _
    // Predicated region
    $region14: #{forward.1} parent=1 // pred_check
      _
    $region15: #{forward.1} parent=1 // pred_check_branch
      %33 = sbr.rel (0) target = $region17
    $region16: #{forward.1} parent=1 // pred_region
      _
    $region17: #{forward.1} parent=1 // pred_fallthru
      _
    // Predicated region
    $region18: #{forward.1} parent=1 // pred_check
      _
    $region19: #{forward.1} parent=1 // pred_check_branch
      %35 = sbr.rel (0) target = $region21
    $region20: #{forward.1} parent=1 // pred_region
      _
    $region21: #{forward.1} parent=1 // pred_fallthru
      _
    // Predicated region
    $region22: #{forward.1} parent=1 // pred_check
      _
    $region23: #{forward.1} parent=1 // pred_check_branch
      %37 = sbr.rel (0) target = $region25
    $region24: #{forward.1} parent=1 // pred_region
      %s39 = ssub.s32 1280, 1280
      %40 = vsyncadd [#allocation5], %s39
      %s41 = sshll.u32 [#allocation4], 4
      %s42 = int_to_ptr.vmem [resolvable:$true] %s41
      %47 = dma.hbm_to_vmem [thread:$0]  %s5, 1280, %s42, [#allocation5], 256, 256, 16
    $region25: #{forward.1} parent=1 // pred_fallthru
      _
    // Predicated region
    $region26: #{forward.1} parent=1 // pred_check
      _
    $region27: #{forward.1} parent=1 // pred_check_branch
      %49 = sbr.rel (0) target = $region29
    $region28: #{forward.1} parent=1 // pred_region
      %s51 = ssub.s32 1280, 1280
      %52 = vsyncadd [#allocation5], %s51
      %s53 = sshll.u32 [#allocation6], 4
      %s54 = int_to_ptr.vmem [resolvable:$true] %s53
      %59 = dma.hbm_to_vmem [thread:$0]  %s6, 1280, %s54, [#allocation5], 256, 256, 16
    $region29: #{forward.1} parent=1 // pred_fallthru
      _
    // Predicated region
    $region30: #{forward.1} parent=1 // pred_check
      _
    $region31: #{forward.1} parent=1 // pred_check_branch
      %61 = sbr.rel (0) target = $region33
    $region32: #{forward.1} parent=1 // pred_region
      %s63 = ssub.s32 4608, 4608
      %64 = vsyncadd [#allocation8], %s63
      %s65 = sshll.u32 [#allocation7], 4
      %s66 = int_to_ptr.vmem [resolvable:$true] %s65
      %71 = dma.hbm_to_vmem [thread:$0]  %s7, 4608, %s66, [#allocation8], 512, 512, 32
    $region33: #{forward.1} parent=1 // pred_fallthru
      _
    // Predicated region
    $region34: #{forward.1} parent=1 // pred_check
      _
    $region35: #{forward.1} parent=1 // pred_check_branch
      %73 = sbr.rel (0) target = $region37
    $region36: #{forward.1} parent=1 // pred_region
      %74 = dma.done [#allocation3], 256
    $region37: #{forward.1} parent=1 // pred_fallthru
      _
    // Predicated region
    $region38: #{forward.1} parent=1 // pred_check
      _
    $region39: #{forward.1} parent=1 // pred_check_branch
      %76 = sbr.rel (0) target = $region41
    $region40: #{forward.1} parent=1 // pred_region
      %77 = dma.done [#allocation5], 1280
    $region41: #{forward.1} parent=1 // pred_fallthru
      _
    // Predicated region
    $region42: #{forward.1} parent=1 // pred_check
      _
    $region43: #{forward.1} parent=1 // pred_check_branch
      %79 = sbr.rel (0) target = $region45
    $region44: #{forward.1} parent=1 // pred_region
      %80 = dma.done [#allocation5], 1280
    $region45: #{forward.1} parent=1 // pred_fallthru
      _
    // Predicated region
    $region46: #{forward.1} parent=1 // pred_check
      _
    $region47: #{forward.1} parent=1 // pred_check_branch
      %82 = sbr.rel (0) target = $region49
    $region48: #{forward.1} parent=1 // pred_region
      %83 = dma.done [#allocation8], 4608
    $region49: #{forward.1} parent=1 // pred_fallthru
      _
    %v84 = vld [vmem:[%s0] sm:$0xff]
    %v85 = vld [vmem:[%s0 + $0x8] sm:$0xff]
    %v86 = vld [vmem:[%s1] sm:$0x3]
    %v87 = vld [vmem:[#allocation2] sm:$0xff]
    %v88 = vld [vmem:[#allocation2 + $0x8] sm:$0xff]
    %v89 = vld [vmem:[%s3] sm:$0xff]
    %v90 = vld [vmem:[%s3 + $0x8] sm:$0xff]
    %v91 = vld [vmem:[%s4] sm:$0x3]
    %v92 = vld [vmem:[#allocation4] sm:$0xff]
    %v93 = vld [vmem:[#allocation4 + $0x8] sm:$0xff]
    %v94 = vld [vmem:[#allocation4 + $0x10] sm:$0xff]
    %v95 = vld [vmem:[#allocation4 + $0x18] sm:$0xff]
    %v96 = vld [vmem:[#allocation4 + $0x20] sm:$0xff]
    %v97 = vld [vmem:[#allocation4 + $0x28] sm:$0xff]
    %v98 = vld [vmem:[#allocation4 + $0x30] sm:$0xff]
    %v99 = vld [vmem:[#allocation4 + $0x38] sm:$0xff]
    %s100 = scalar_lea.vmem [#allocation4], 64
    %v101 = vld [vmem:[%s100] ss:$8 sm:$0x3]
    %v103 = vlaneseq
    %v104 = vshrl.u32 %v103, 7
    %v105 = vsub.s32 0, %v104
    %v106 = vrot.slane %v101, %v105
    %v107 = vlaneseq
    %v108 = vshrl.u32 %v107, 7
    %v109 = vsub.s32 1, %v108
    %v110 = vrot.slane %v101, %v109
    %vm113 = vcmask 261120
    %v115 = vsel %vm113, %v84, 0
    %v118 = vsel %vm113, %v85, 0
    %120 = vmatprep.subr.mxu0 %v93
    %121 = vmatpush1.msra.mxu0 %v92
    %122 = vmatprep.subr.mxu0 %v95
    %123 = vmatpush1.msra.mxu0 %v94
    %124 = vmatprep.subr.mxu0 %v97
    %125 = vmatpush1.msra.mxu0 %v96
    %126 = vmatprep.subr.mxu0 %v99
    %127 = vmatpush1.msra.mxu0 %v98
    %128 = vmatprep.subr.mxu0 0.0
    %129 = vmatpush1.msra.mxu0 0.0
    %130 = vmatprep.subr.mxu0 0.0
    %131 = vmatpush1.msra.mxu0 0.0
    %132 = vmatprep.subr.mxu0 0.0
    %133 = vmatpush1.msra.mxu0 0.0
    %134 = vmatprep.subr.mxu0 0.0
    %135 = vmatpush1.msra.mxu0 0.0
    %136 = vmatprep.subr.mxu0 0.0
    %137 = vmatpush1.msra.mxu0 0.0
    %138 = vmatprep.subr.mxu0 0.0
    %139 = vmatpush1.msra.mxu0 0.0
    %140 = vmatprep.subr.mxu0 0.0
    %141 = vmatpush1.msra.mxu0 0.0
    %142 = vmatprep.subr.mxu0 0.0
    %143 = vmatpush1.msra.mxu0 0.0
    %144 = vmatprep.subr.mxu0 0.0
    %145 = vmatpush1.msra.mxu0 0.0
    %146 = vmatprep.subr.mxu0 0.0
    %147 = vmatpush1.msra.mxu0 0.0
    %148 = vmatprep.subr.mxu0 0.0
    %149 = vmatpush1.msra.mxu0 0.0
    %150 = vmatprep.subr.mxu0 0.0
    %151 = vmatpush1.msra.mxu0 0.0
    %152 = vmatprep.subr.mxu0 0.0
    %153 = vmatpush1.msra.mxu0 0.0
    %154 = vmatprep.subr.mxu0 0.0
    %155 = vmatpush1.msra.mxu0 0.0
    %156 = vmatprep.subr.mxu0 0.0
    %157 = vmatpush1.msra.mxu0 0.0
    %158 = vmatprep.subr.mxu0 0.0
    %159 = vmatpush1.msra.mxu0 0.0
    %160 = vmatprep.subr.mxu0 0.0
    %161 = vmatpush1.msra.mxu0 0.0
    %162 = vmatprep.subr.mxu0 0.0
    %163 = vmatpush1.msra.mxu0 0.0
    %164 = vmatprep.subr.mxu0 0.0
    %165 = vmatpush1.msra.mxu0 0.0
    %166 = vmatprep.subr.mxu0 0.0
    %167 = vmatpush1.msra.mxu0 0.0
    %168 = vmatprep.subr.mxu0 0.0
    %169 = vmatpush1.msra.mxu0 0.0
    %170 = vmatprep.subr.mxu0 0.0
    %171 = vmatpush1.msra.mxu0 0.0
    %172 = vmatprep.subr.mxu0 0.0
    %173 = vmatpush1.msra.mxu0 0.0
    %174 = vmatprep.subr.mxu0 0.0
    %175 = vmatpush1.msra.mxu0 0.0
    %176 = vmatprep.subr.mxu0 0.0
    %177 = vmatpush1.msra.mxu0 0.0
    %178 = vmatprep.subr.mxu0 0.0
    %179 = vmatpush1.msra.mxu0 0.0
    %180 = vmatprep.subr.mxu0 0.0
    %181 = vmatpush1.msra.mxu0 0.0
    %182 = vmatprep.subr.mxu0 0.0
    %183 = vmatpush1.msra.mxu0 0.0
    %184 = vmatprep.mubr.f32.mxu0 0.0
    %185 = vmatmul.mubr.f32.gmra.mrb[0].mxu0 %v115
    %v186 = vpop.f32.mrb[0].mxu0
    %v187 = vadd.f32 %v106, %v186
    %v188 = vpop.f32.mrb[0].mxu0
    %v189 = vadd.f32 %v110, %v188
    %190 = vmatprep.mubr.f32.mxu0 0.0
    %191 = vmatmul.mubr.f32.gmra.mrb[0].mxu0 %v118
    %v192 = vpop.f32.mrb[0].mxu0
    %v193 = vadd.f32 %v106, %v192
    %v194 = vpop.f32.mrb[0].mxu0
    %v195 = vadd.f32 %v110, %v194
    %196 = vdwg.mxu0
    %v197 = vld [vmem:[#allocation6] sm:$0xff]
    %v198 = vld [vmem:[#allocation6 + $0x8] sm:$0xff]
    %v199 = vld [vmem:[#allocation6 + $0x10] sm:$0xff]
    %v200 = vld [vmem:[#allocation6 + $0x18] sm:$0xff]
    %v201 = vld [vmem:[#allocation6 + $0x20] sm:$0xff]
    %v202 = vld [vmem:[#allocation6 + $0x28] sm:$0xff]
    %v203 = vld [vmem:[#allocation6 + $0x30] sm:$0xff]
    %v204 = vld [vmem:[#allocation6 + $0x38] sm:$0xff]
    %s205 = scalar_lea.vmem [#allocation6], 64
    %v206 = vld [vmem:[%s205] ss:$8 sm:$0x3]
    %v208 = vlaneseq
    %v209 = vshrl.u32 %v208, 7
    %v210 = vsub.s32 0, %v209
    %v211 = vrot.slane %v206, %v210
    %v212 = vlaneseq
    %v213 = vshrl.u32 %v212, 7
    %v214 = vsub.s32 1, %v213
    %v215 = vrot.slane %v206, %v214
    %v219 = vsel %vm113, %v86, 0
    %221 = vmatprep.subr.mxu0 %v198
    %222 = vmatpush1.msra.mxu0 %v197
    %223 = vmatprep.subr.mxu0 %v200
    %224 = vmatpush1.msra.mxu0 %v199
    %225 = vmatprep.subr.mxu0 %v202
    %226 = vmatpush1.msra.mxu0 %v201
    %227 = vmatprep.subr.mxu0 %v204
    %228 = vmatpush1.msra.mxu0 %v203
    %229 = vmatprep.subr.mxu0 0.0
    %230 = vmatpush1.msra.mxu0 0.0
    %231 = vmatprep.subr.mxu0 0.0
    %232 = vmatpush1.msra.mxu0 0.0
    %233 = vmatprep.subr.mxu0 0.0
    %234 = vmatpush1.msra.mxu0 0.0
    %235 = vmatprep.subr.mxu0 0.0
    %236 = vmatpush1.msra.mxu0 0.0
    %237 = vmatprep.subr.mxu0 0.0
    %238 = vmatpush1.msra.mxu0 0.0
    %239 = vmatprep.subr.mxu0 0.0
    %240 = vmatpush1.msra.mxu0 0.0
    %241 = vmatprep.subr.mxu0 0.0
    %242 = vmatpush1.msra.mxu0 0.0
    %243 = vmatprep.subr.mxu0 0.0
    %244 = vmatpush1.msra.mxu0 0.0
    %245 = vmatprep.subr.mxu0 0.0
    %246 = vmatpush1.msra.mxu0 0.0
    %247 = vmatprep.subr.mxu0 0.0
    %248 = vmatpush1.msra.mxu0 0.0
    %249 = vmatprep.subr.mxu0 0.0
    %250 = vmatpush1.msra.mxu0 0.0
    %251 = vmatprep.subr.mxu0 0.0
    %252 = vmatpush1.msra.mxu0 0.0
    %253 = vmatprep.subr.mxu0 0.0
    %254 = vmatpush1.msra.mxu0 0.0
    %255 = vmatprep.subr.mxu0 0.0
    %256 = vmatpush1.msra.mxu0 0.0
    %257 = vmatprep.subr.mxu0 0.0
    %258 = vmatpush1.msra.mxu0 0.0
    %259 = vmatprep.subr.mxu0 0.0
    %260 = vmatpush1.msra.mxu0 0.0
    %261 = vmatprep.subr.mxu0 0.0
    %262 = vmatpush1.msra.mxu0 0.0
    %263 = vmatprep.subr.mxu0 0.0
    %264 = vmatpush1.msra.mxu0 0.0
    %265 = vmatprep.subr.mxu0 0.0
    %266 = vmatpush1.msra.mxu0 0.0
    %267 = vmatprep.subr.mxu0 0.0
    %268 = vmatpush1.msra.mxu0 0.0
    %269 = vmatprep.subr.mxu0 0.0
    %270 = vmatpush1.msra.mxu0 0.0
    %271 = vmatprep.subr.mxu0 0.0
    %272 = vmatpush1.msra.mxu0 0.0
    %273 = vmatprep.subr.mxu0 0.0
    %274 = vmatpush1.msra.mxu0 0.0
    %275 = vmatprep.subr.mxu0 0.0
    %276 = vmatpush1.msra.mxu0 0.0
    %277 = vmatprep.subr.mxu0 0.0
    %278 = vmatpush1.msra.mxu0 0.0
    %279 = vmatprep.subr.mxu0 0.0
    %280 = vmatpush1.msra.mxu0 0.0
    %281 = vmatprep.subr.mxu0 0.0
    %282 = vmatpush1.msra.mxu0 0.0
    %283 = vmatprep.subr.mxu0 0.0
    %284 = vmatpush1.msra.mxu0 0.0
    %285 = vmatprep.mubr.f32.mxu0 0.0
    %286 = vmatmul.mubr.f32.gmra.mrb[0].mxu0 %v219
    %v287 = vpop.f32.mrb[0].mxu0
    %v288 = vadd.f32 %v211, %v287
    %v289 = vpop.f32.mrb[0].mxu0
    %v290 = vadd.f32 %v215, %v289
    %291 = vdwg.mxu0
    %v292 = vtanh.pop %v187
    %v293 = vtanh.pop %v193
    %v294 = vtanh.pop %v288
    %vm295 = vcmask 15360
    %v297 = vsel %vm295, %v89, 0
    %v300 = vsel %vm295, %v90, 0
    %vm302 = vcmask 1041408
    %v304 = vsel %vm302, %v294, 0
    %306 = vmatprep.subr.mxu0 0.0
    %307 = vmatpush1.msra.mxu0 %v304
    %308 = vmatprep.subr.mxu0 0.0
    %309 = vmatpush1.msra.mxu0 0.0
    %310 = vmatprep.subr.mxu0 0.0
    %311 = vmatpush1.msra.mxu0 0.0
    %312 = vmatprep.subr.mxu0 0.0
    %313 = vmatpush1.msra.mxu0 0.0
    %314 = vmatprep.subr.mxu0 0.0
    %315 = vmatpush1.msra.mxu0 0.0
    %316 = vmatprep.subr.mxu0 0.0
    %317 = vmatpush1.msra.mxu0 0.0
    %318 = vmatprep.subr.mxu0 0.0
    %319 = vmatpush1.msra.mxu0 0.0
    %320 = vmatprep.subr.mxu0 0.0
    %321 = vmatpush1.msra.mxu0 0.0
    %322 = vmatprep.subr.mxu0 0.0
    %323 = vmatpush1.msra.mxu0 0.0
    %324 = vmatprep.subr.mxu0 0.0
    %325 = vmatpush1.msra.mxu0 0.0
    %326 = vmatprep.subr.mxu0 0.0
    %327 = vmatpush1.msra.mxu0 0.0
    %328 = vmatprep.subr.mxu0 0.0
    %329 = vmatpush1.msra.mxu0 0.0
    %330 = vmatprep.subr.mxu0 0.0
    %331 = vmatpush1.msra.mxu0 0.0
    %332 = vmatprep.subr.mxu0 0.0
    %333 = vmatpush1.msra.mxu0 0.0
    %334 = vmatprep.subr.mxu0 0.0
    %335 = vmatpush1.msra.mxu0 0.0
    %336 = vmatprep.subr.mxu0 0.0
    %337 = vmatpush1.msra.mxu0 0.0
    %338 = vmatprep.subr.mxu0 0.0
    %339 = vmatpush1.msra.mxu0 0.0
    %340 = vmatprep.subr.mxu0 0.0
    %341 = vmatpush1.msra.mxu0 0.0
    %342 = vmatprep.subr.mxu0 0.0
    %343 = vmatpush1.msra.mxu0 0.0
    %344 = vmatprep.subr.mxu0 0.0
    %345 = vmatpush1.msra.mxu0 0.0
    %346 = vmatprep.subr.mxu0 0.0
    %347 = vmatpush1.msra.mxu0 0.0
    %348 = vmatprep.subr.mxu0 0.0
    %349 = vmatpush1.msra.mxu0 0.0
    %350 = vmatprep.subr.mxu0 0.0
    %351 = vmatpush1.msra.mxu0 0.0
    %352 = vmatprep.subr.mxu0 0.0
    %353 = vmatpush1.msra.mxu0 0.0
    %354 = vmatprep.subr.mxu0 0.0
    %355 = vmatpush1.msra.mxu0 0.0
    %356 = vmatprep.subr.mxu0 0.0
    %357 = vmatpush1.msra.mxu0 0.0
    %358 = vmatprep.subr.mxu0 0.0
    %359 = vmatpush1.msra.mxu0 0.0
    %360 = vmatprep.subr.mxu0 0.0
    %361 = vmatpush1.msra.mxu0 0.0
    %362 = vmatprep.subr.mxu0 0.0
    %363 = vmatpush1.msra.mxu0 0.0
    %364 = vmatprep.subr.mxu0 0.0
    %365 = vmatpush1.msra.mxu0 0.0
    %366 = vmatprep.subr.mxu0 0.0
    %367 = vmatpush1.msra.mxu0 0.0
    %368 = vmatprep.subr.mxu0 0.0
    %369 = vmatpush1.msra.mxu0 0.0
    %370 = vmatprep.mubr.f32.mxu0 0.0
    %371 = vmatmul.mubr.f32.gmra.mrb[0].mxu0 %v297
    %v372 = vpop.f32.mrb[0].mxu0
    %v373 = vadd.f32 0.0, %v372
    %v374 = vpop.f32.mrb[0].mxu0
    %375 = vmatprep.mubr.f32.mxu0 0.0
    %376 = vmatmul.mubr.f32.gmra.mrb[0].mxu0 %v300
    %v377 = vpop.f32.mrb[0].mxu0
    %v378 = vadd.f32 0.0, %v377
    %v379 = vpop.f32.mrb[0].mxu0
    %380 = vdwg.mxu0
    %v381 = vmul.f32 %v292, %v373
    %v382 = vmul.f32 %v293, %v378
    %v383 = vld [vmem:[#allocation7] sm:$0xff]
    %v384 = vld [vmem:[#allocation7 + $0x20] sm:$0xff]
    %v385 = vld [vmem:[#allocation7 + $0x40] sm:$0xff]
    %v386 = vld [vmem:[#allocation7 + $0x60] sm:$0xff]
    %v387 = vld [vmem:[#allocation7 + $0x80] sm:$0xff]
    %v388 = vld [vmem:[#allocation7 + $0xa0] sm:$0xff]
    %v389 = vld [vmem:[#allocation7 + $0xc0] sm:$0xff]
    %v390 = vld [vmem:[#allocation7 + $0xe0] sm:$0xff]
    %v391 = vld [vmem:[#allocation7 + $0x100] ss:$0 sm:$0xff]
    %400 = vrot.lane.b32.xlu0 %v383, 64
    %v401 = vpop.permute.xlu0 %400
    %402 = vrot.lane.b32.xlu0 %v384, 64
    %v403 = vpop.permute.xlu0 %402
    %404 = vrot.lane.b32.xlu0 %v385, 64
    %v405 = vpop.permute.xlu0 %404
    %406 = vrot.lane.b32.xlu0 %v386, 64
    %v407 = vpop.permute.xlu0 %406
    %408 = vrot.lane.b32.xlu0 %v387, 64
    %v409 = vpop.permute.xlu0 %408
    %410 = vrot.lane.b32.xlu0 %v388, 64
    %v411 = vpop.permute.xlu0 %410
    %412 = vrot.lane.b32.xlu0 %v389, 64
    %v413 = vpop.permute.xlu0 %412
    %414 = vrot.lane.b32.xlu0 %v390, 64
    %v415 = vpop.permute.xlu0 %414
    %425 = vrot.lane.b32.xlu0 %v391, 64
    %v426 = vpop.permute.xlu0 %425
    %vm428 = vcmask 523264
    %v430 = vsel %vm428, %v381, 0
    %v433 = vsel %vm428, %v382, 0
    %435 = vmatprep.subr.mxu0 0.0
    %436 = vmatpush1.msra.mxu0 %v401
    %437 = vmatprep.subr.mxu0 0.0
    %438 = vmatpush1.msra.mxu0 %v403
    %439 = vmatprep.subr.mxu0 0.0
    %440 = vmatpush1.msra.mxu0 %v405
    %441 = vmatprep.subr.mxu0 0.0
    %442 = vmatpush1.msra.mxu0 %v407
    %443 = vmatprep.subr.mxu0 0.0
    %444 = vmatpush1.msra.mxu0 %v409
    %445 = vmatprep.subr.mxu0 0.0
    %446 = vmatpush1.msra.mxu0 %v411
    %447 = vmatprep.subr.mxu0 0.0
    %448 = vmatpush1.msra.mxu0 %v413
    %449 = vmatprep.subr.mxu0 0.0
    %450 = vmatpush1.msra.mxu0 %v415
    %451 = vmatprep.subr.mxu0 0.0
    %452 = vmatpush1.msra.mxu0 0.0
    %453 = vmatprep.subr.mxu0 0.0
    %454 = vmatpush1.msra.mxu0 0.0
    %455 = vmatprep.subr.mxu0 0.0
    %456 = vmatpush1.msra.mxu0 0.0
    %457 = vmatprep.subr.mxu0 0.0
    %458 = vmatpush1.msra.mxu0 0.0
    %459 = vmatprep.subr.mxu0 0.0
    %460 = vmatpush1.msra.mxu0 0.0
    %461 = vmatprep.subr.mxu0 0.0
    %462 = vmatpush1.msra.mxu0 0.0
    %463 = vmatprep.subr.mxu0 0.0
    %464 = vmatpush1.msra.mxu0 0.0
    %465 = vmatprep.subr.mxu0 0.0
    %466 = vmatpush1.msra.mxu0 0.0
    %467 = vmatprep.subr.mxu0 0.0
    %468 = vmatpush1.msra.mxu0 0.0
    %469 = vmatprep.subr.mxu0 0.0
    %470 = vmatpush1.msra.mxu0 0.0
    %471 = vmatprep.subr.mxu0 0.0
    %472 = vmatpush1.msra.mxu0 0.0
    %473 = vmatprep.subr.mxu0 0.0
    %474 = vmatpush1.msra.mxu0 0.0
    %475 = vmatprep.subr.mxu0 0.0
    %476 = vmatpush1.msra.mxu0 0.0
    %477 = vmatprep.subr.mxu0 0.0
    %478 = vmatpush1.msra.mxu0 0.0
    %479 = vmatprep.subr.mxu0 0.0
    %480 = vmatpush1.msra.mxu0 0.0
    %481 = vmatprep.subr.mxu0 0.0
    %482 = vmatpush1.msra.mxu0 0.0
    %483 = vmatprep.subr.mxu0 0.0
    %484 = vmatpush1.msra.mxu0 0.0
    %485 = vmatprep.subr.mxu0 0.0
    %486 = vmatpush1.msra.mxu0 0.0
    %487 = vmatprep.subr.mxu0 0.0
    %488 = vmatpush1.msra.mxu0 0.0
    %489 = vmatprep.subr.mxu0 0.0
    %490 = vmatpush1.msra.mxu0 0.0
    %491 = vmatprep.subr.mxu0 0.0
    %492 = vmatpush1.msra.mxu0 0.0
    %493 = vmatprep.subr.mxu0 0.0
    %494 = vmatpush1.msra.mxu0 0.0
    %495 = vmatprep.subr.mxu0 0.0
    %496 = vmatpush1.msra.mxu0 0.0
    %497 = vmatprep.subr.mxu0 0.0
    %498 = vmatpush1.msra.mxu0 0.0
    %499 = vmatprep.mubr.f32.mxu0 0.0
    %500 = vmatmul.mubr.f32.gmra.mrb[0].mxu0 %v430
    %v501 = vpop.f32.mrb[0].mxu0
    %v502 = vadd.f32 %v426, %v501
    %v503 = vpop.f32.mrb[0].mxu0
    %504 = vmatprep.mubr.f32.mxu0 0.0
    %505 = vmatmul.mubr.f32.gmra.mrb[0].mxu0 %v433
    %v506 = vpop.f32.mrb[0].mxu0
    %v507 = vadd.f32 %v426, %v506
    %v508 = vpop.f32.mrb[0].mxu0
    %509 = vdwg.mxu0
    %vm510 = vcmask 123904
    %v511 = vsel %vm510, %v91, 0.0
    %512 = vadd.xlane.f32.xlu0 %v511
    %v513 = vpop.xlane.xlu0 %512
    %vm514 = vcmask 130048
    %v516 = vsel %vm514, %v91, 0
    %518 = vmatprep.subr.mxu0 0.0
    %519 = vmatpush1.msra.mxu0 %v502
    %520 = vmatprep.subr.mxu0 0.0
    %521 = vmatpush1.msra.mxu0 %v507
    %522 = vmatprep.subr.mxu0 0.0
    %523 = vmatpush1.msra.mxu0 0.0
    %524 = vmatprep.subr.mxu0 0.0
    %525 = vmatpush1.msra.mxu0 0.0
    %526 = vmatprep.subr.mxu0 0.0
    %527 = vmatpush1.msra.mxu0 0.0
    %528 = vmatprep.subr.mxu0 0.0
    %529 = vmatpush1.msra.mxu0 0.0
    %530 = vmatprep.subr.mxu0 0.0
    %531 = vmatpush1.msra.mxu0 0.0
    %532 = vmatprep.subr.mxu0 0.0
    %533 = vmatpush1.msra.mxu0 0.0
    %534 = vmatprep.subr.mxu0 0.0
    %535 = vmatpush1.msra.mxu0 0.0
    %536 = vmatprep.subr.mxu0 0.0
    %537 = vmatpush1.msra.mxu0 0.0
    %538 = vmatprep.subr.mxu0 0.0
    %539 = vmatpush1.msra.mxu0 0.0
    %540 = vmatprep.subr.mxu0 0.0
    %541 = vmatpush1.msra.mxu0 0.0
    %542 = vmatprep.subr.mxu0 0.0
    %543 = vmatpush1.msra.mxu0 0.0
    %544 = vmatprep.subr.mxu0 0.0
    %545 = vmatpush1.msra.mxu0 0.0
    %546 = vmatprep.subr.mxu0 0.0
    %547 = vmatpush1.msra.mxu0 0.0
    %548 = vmatprep.subr.mxu0 0.0
    %549 = vmatpush1.msra.mxu0 0.0
    %550 = vmatprep.subr.mxu0 0.0
    %551 = vmatpush1.msra.mxu0 0.0
    %552 = vmatprep.subr.mxu0 0.0
    %553 = vmatpush1.msra.mxu0 0.0
    %554 = vmatprep.subr.mxu0 0.0
    %555 = vmatpush1.msra.mxu0 0.0
    %556 = vmatprep.subr.mxu0 0.0
    %557 = vmatpush1.msra.mxu0 0.0
    %558 = vmatprep.subr.mxu0 0.0
    %559 = vmatpush1.msra.mxu0 0.0
    %560 = vmatprep.subr.mxu0 0.0
    %561 = vmatpush1.msra.mxu0 0.0
    %562 = vmatprep.subr.mxu0 0.0
    %563 = vmatpush1.msra.mxu0 0.0
    %564 = vmatprep.subr.mxu0 0.0
    %565 = vmatpush1.msra.mxu0 0.0
    %566 = vmatprep.subr.mxu0 0.0
    %567 = vmatpush1.msra.mxu0 0.0
    %568 = vmatprep.subr.mxu0 0.0
    %569 = vmatpush1.msra.mxu0 0.0
    %570 = vmatprep.subr.mxu0 0.0
    %571 = vmatpush1.msra.mxu0 0.0
    %572 = vmatprep.subr.mxu0 0.0
    %573 = vmatpush1.msra.mxu0 0.0
    %574 = vmatprep.subr.mxu0 0.0
    %575 = vmatpush1.msra.mxu0 0.0
    %576 = vmatprep.subr.mxu0 0.0
    %577 = vmatpush1.msra.mxu0 0.0
    %578 = vmatprep.subr.mxu0 0.0
    %579 = vmatpush1.msra.mxu0 0.0
    %580 = vmatprep.subr.mxu0 0.0
    %581 = vmatpush1.msra.mxu0 0.0
    %582 = vmatprep.mubr.f32.mxu0 0.0
    %583 = vmatmul.mubr.f32.gmra.mrb[0].mxu0 %v516
    %v584 = vpop.f32.mrb[0].mxu0
    %v585 = vadd.f32 0.0, %v584
    %v586 = vpop.f32.mrb[0].mxu0
    %587 = vdwg.mxu0
    %v588 = vrcp.pop %v513
    %v589 = vmul.f32 %v585, %v588
    %v591 = vsel %vm302, %v589, 0
    %593 = vmatprep.subr.mxu0 0.0
    %594 = vmatpush1.msra.mxu0 %v591
    %595 = vmatprep.subr.mxu0 0.0
    %596 = vmatpush1.msra.mxu0 0.0
    %597 = vmatprep.subr.mxu0 0.0
    %598 = vmatpush1.msra.mxu0 0.0
    %599 = vmatprep.subr.mxu0 0.0
    %600 = vmatpush1.msra.mxu0 0.0
    %601 = vmatprep.subr.mxu0 0.0
    %602 = vmatpush1.msra.mxu0 0.0
    %603 = vmatprep.subr.mxu0 0.0
    %604 = vmatpush1.msra.mxu0 0.0
    %605 = vmatprep.subr.mxu0 0.0
    %606 = vmatpush1.msra.mxu0 0.0
    %607 = vmatprep.subr.mxu0 0.0
    %608 = vmatpush1.msra.mxu0 0.0
    %609 = vmatprep.subr.mxu0 0.0
    %610 = vmatpush1.msra.mxu0 0.0
    %611 = vmatprep.subr.mxu0 0.0
    %612 = vmatpush1.msra.mxu0 0.0
    %613 = vmatprep.subr.mxu0 0.0
    %614 = vmatpush1.msra.mxu0 0.0
    %615 = vmatprep.subr.mxu0 0.0
    %616 = vmatpush1.msra.mxu0 0.0
    %617 = vmatprep.subr.mxu0 0.0
    %618 = vmatpush1.msra.mxu0 0.0
    %619 = vmatprep.subr.mxu0 0.0
    %620 = vmatpush1.msra.mxu0 0.0
    %621 = vmatprep.subr.mxu0 0.0
    %622 = vmatpush1.msra.mxu0 0.0
    %623 = vmatprep.subr.mxu0 0.0
    %624 = vmatpush1.msra.mxu0 0.0
    %625 = vmatprep.subr.mxu0 0.0
    %626 = vmatpush1.msra.mxu0 0.0
    %627 = vmatprep.subr.mxu0 0.0
    %628 = vmatpush1.msra.mxu0 0.0
    %629 = vmatprep.subr.mxu0 0.0
    %630 = vmatpush1.msra.mxu0 0.0
    %631 = vmatprep.subr.mxu0 0.0
    %632 = vmatpush1.msra.mxu0 0.0
    %633 = vmatprep.subr.mxu0 0.0
    %634 = vmatpush1.msra.mxu0 0.0
    %635 = vmatprep.subr.mxu0 0.0
    %636 = vmatpush1.msra.mxu0 0.0
    %637 = vmatprep.subr.mxu0 0.0
    %638 = vmatpush1.msra.mxu0 0.0
    %639 = vmatprep.subr.mxu0 0.0
    %640 = vmatpush1.msra.mxu0 0.0
    %641 = vmatprep.subr.mxu0 0.0
    %642 = vmatpush1.msra.mxu0 0.0
    %643 = vmatprep.subr.mxu0 0.0
    %644 = vmatpush1.msra.mxu0 0.0
    %645 = vmatprep.subr.mxu0 0.0
    %646 = vmatpush1.msra.mxu0 0.0
    %647 = vmatprep.subr.mxu0 0.0
    %648 = vmatpush1.msra.mxu0 0.0
    %649 = vmatprep.subr.mxu0 0.0
    %650 = vmatpush1.msra.mxu0 0.0
    %651 = vmatprep.subr.mxu0 0.0
    %652 = vmatpush1.msra.mxu0 0.0
    %653 = vmatprep.subr.mxu0 0.0
    %654 = vmatpush1.msra.mxu0 0.0
    %655 = vmatprep.subr.mxu0 0.0
    %656 = vmatpush1.msra.mxu0 0.0
    %657 = vmatprep.mubr.f32.mxu0 0.0
    %658 = vmatmul.mubr.f32.gmra.mrb[0].mxu0 %v297
    %v659 = vpop.f32.mrb[0].mxu0
    %v660 = vadd.f32 0.0, %v659
    %v661 = vpop.f32.mrb[0].mxu0
    %662 = vmatprep.mubr.f32.mxu0 0.0
    %663 = vmatmul.mubr.f32.gmra.mrb[0].mxu0 %v300
    %v664 = vpop.f32.mrb[0].mxu0
    %v665 = vadd.f32 0.0, %v664
    %v666 = vpop.f32.mrb[0].mxu0
    %667 = vdwg.mxu0
    %v668 = vsub.f32 %v502, %v660
    %v669 = vsub.f32 %v507, %v665
    %v670 = vmul.f32 %v668, 1.442695
    %v671 = vpow.pop %v670
    %v672 = vmul.f32 %v669, 1.442695
    %v673 = vpow.pop %v672
    %674 = vmatprep.subr.mxu0 0.0
    %675 = vmatpush1.msra.mxu0 %v671
    %676 = vmatprep.subr.mxu0 0.0
    %677 = vmatpush1.msra.mxu0 %v673
    %678 = vmatprep.subr.mxu0 0.0
    %679 = vmatpush1.msra.mxu0 0.0
    %680 = vmatprep.subr.mxu0 0.0
    %681 = vmatpush1.msra.mxu0 0.0
    %682 = vmatprep.subr.mxu0 0.0
    %683 = vmatpush1.msra.mxu0 0.0
    %684 = vmatprep.subr.mxu0 0.0
    %685 = vmatpush1.msra.mxu0 0.0
    %686 = vmatprep.subr.mxu0 0.0
    %687 = vmatpush1.msra.mxu0 0.0
    %688 = vmatprep.subr.mxu0 0.0
    %689 = vmatpush1.msra.mxu0 0.0
    %690 = vmatprep.subr.mxu0 0.0
    %691 = vmatpush1.msra.mxu0 0.0
    %692 = vmatprep.subr.mxu0 0.0
    %693 = vmatpush1.msra.mxu0 0.0
    %694 = vmatprep.subr.mxu0 0.0
    %695 = vmatpush1.msra.mxu0 0.0
    %696 = vmatprep.subr.mxu0 0.0
    %697 = vmatpush1.msra.mxu0 0.0
    %698 = vmatprep.subr.mxu0 0.0
    %699 = vmatpush1.msra.mxu0 0.0
    %700 = vmatprep.subr.mxu0 0.0
    %701 = vmatpush1.msra.mxu0 0.0
    %702 = vmatprep.subr.mxu0 0.0
    %703 = vmatpush1.msra.mxu0 0.0
    %704 = vmatprep.subr.mxu0 0.0
    %705 = vmatpush1.msra.mxu0 0.0
    %706 = vmatprep.subr.mxu0 0.0
    %707 = vmatpush1.msra.mxu0 0.0
    %708 = vmatprep.subr.mxu0 0.0
    %709 = vmatpush1.msra.mxu0 0.0
    %710 = vmatprep.subr.mxu0 0.0
    %711 = vmatpush1.msra.mxu0 0.0
    %712 = vmatprep.subr.mxu0 0.0
    %713 = vmatpush1.msra.mxu0 0.0
    %714 = vmatprep.subr.mxu0 0.0
    %715 = vmatpush1.msra.mxu0 0.0
    %716 = vmatprep.subr.mxu0 0.0
    %717 = vmatpush1.msra.mxu0 0.0
    %718 = vmatprep.subr.mxu0 0.0
    %719 = vmatpush1.msra.mxu0 0.0
    %720 = vmatprep.subr.mxu0 0.0
    %721 = vmatpush1.msra.mxu0 0.0
    %722 = vmatprep.subr.mxu0 0.0
    %723 = vmatpush1.msra.mxu0 0.0
    %724 = vmatprep.subr.mxu0 0.0
    %725 = vmatpush1.msra.mxu0 0.0
    %726 = vmatprep.subr.mxu0 0.0
    %727 = vmatpush1.msra.mxu0 0.0
    %728 = vmatprep.subr.mxu0 0.0
    %729 = vmatpush1.msra.mxu0 0.0
    %730 = vmatprep.subr.mxu0 0.0
    %731 = vmatpush1.msra.mxu0 0.0
    %732 = vmatprep.subr.mxu0 0.0
    %733 = vmatpush1.msra.mxu0 0.0
    %734 = vmatprep.subr.mxu0 0.0
    %735 = vmatpush1.msra.mxu0 0.0
    %736 = vmatprep.subr.mxu0 0.0
    %737 = vmatpush1.msra.mxu0 0.0
    %738 = vmatprep.mubr.f32.mxu0 0.0
    %739 = vmatmul.mubr.f32.gmra.mrb[0].mxu0 %v516
    %v740 = vpop.f32.mrb[0].mxu0
    %v741 = vadd.f32 0.0, %v740
    %v742 = vpop.f32.mrb[0].mxu0
    %743 = vdwg.mxu0
    %v745 = vsel %vm302, %v741, 0
    %747 = vmatprep.subr.mxu0 0.0
    %748 = vmatpush1.msra.mxu0 %v745
    %749 = vmatprep.subr.mxu0 0.0
    %750 = vmatpush1.msra.mxu0 0.0
    %751 = vmatprep.subr.mxu0 0.0
    %752 = vmatpush1.msra.mxu0 0.0
    %753 = vmatprep.subr.mxu0 0.0
    %754 = vmatpush1.msra.mxu0 0.0
    %755 = vmatprep.subr.mxu0 0.0
    %756 = vmatpush1.msra.mxu0 0.0
    %757 = vmatprep.subr.mxu0 0.0
    %758 = vmatpush1.msra.mxu0 0.0
    %759 = vmatprep.subr.mxu0 0.0
    %760 = vmatpush1.msra.mxu0 0.0
    %761 = vmatprep.subr.mxu0 0.0
    %762 = vmatpush1.msra.mxu0 0.0
    %763 = vmatprep.subr.mxu0 0.0
    %764 = vmatpush1.msra.mxu0 0.0
    %765 = vmatprep.subr.mxu0 0.0
    %766 = vmatpush1.msra.mxu0 0.0
    %767 = vmatprep.subr.mxu0 0.0
    %768 = vmatpush1.msra.mxu0 0.0
    %769 = vmatprep.subr.mxu0 0.0
    %770 = vmatpush1.msra.mxu0 0.0
    %771 = vmatprep.subr.mxu0 0.0
    %772 = vmatpush1.msra.mxu0 0.0
    %773 = vmatprep.subr.mxu0 0.0
    %774 = vmatpush1.msra.mxu0 0.0
    %775 = vmatprep.subr.mxu0 0.0
    %776 = vmatpush1.msra.mxu0 0.0
    %777 = vmatprep.subr.mxu0 0.0
    %778 = vmatpush1.msra.mxu0 0.0
    %779 = vmatprep.subr.mxu0 0.0
    %780 = vmatpush1.msra.mxu0 0.0
    %781 = vmatprep.subr.mxu0 0.0
    %782 = vmatpush1.msra.mxu0 0.0
    %783 = vmatprep.subr.mxu0 0.0
    %784 = vmatpush1.msra.mxu0 0.0
    %785 = vmatprep.subr.mxu0 0.0
    %786 = vmatpush1.msra.mxu0 0.0
    %787 = vmatprep.subr.mxu0 0.0
    %788 = vmatpush1.msra.mxu0 0.0
    %789 = vmatprep.subr.mxu0 0.0
    %790 = vmatpush1.msra.mxu0 0.0
    %791 = vmatprep.subr.mxu0 0.0
    %792 = vmatpush1.msra.mxu0 0.0
    %793 = vmatprep.subr.mxu0 0.0
    %794 = vmatpush1.msra.mxu0 0.0
    %795 = vmatprep.subr.mxu0 0.0
    %796 = vmatpush1.msra.mxu0 0.0
    %797 = vmatprep.subr.mxu0 0.0
    %798 = vmatpush1.msra.mxu0 0.0
    %799 = vmatprep.subr.mxu0 0.0
    %800 = vmatpush1.msra.mxu0 0.0
    %801 = vmatprep.subr.mxu0 0.0
    %802 = vmatpush1.msra.mxu0 0.0
    %803 = vmatprep.subr.mxu0 0.0
    %804 = vmatpush1.msra.mxu0 0.0
    %805 = vmatprep.subr.mxu0 0.0
    %806 = vmatpush1.msra.mxu0 0.0
    %807 = vmatprep.subr.mxu0 0.0
    %808 = vmatpush1.msra.mxu0 0.0
    %809 = vmatprep.subr.mxu0 0.0
    %810 = vmatpush1.msra.mxu0 0.0
    %811 = vmatprep.mubr.f32.mxu0 0.0
    %812 = vmatmul.mubr.f32.gmra.mrb[0].mxu0 %v297
    %v813 = vpop.f32.mrb[0].mxu0
    %v814 = vadd.f32 0.0, %v813
    %v815 = vpop.f32.mrb[0].mxu0
    %816 = vmatprep.mubr.f32.mxu0 0.0
    %817 = vmatmul.mubr.f32.gmra.mrb[0].mxu0 %v300
    %v818 = vpop.f32.mrb[0].mxu0
    %v819 = vadd.f32 0.0, %v818
    %v820 = vpop.f32.mrb[0].mxu0
    %821 = vdwg.mxu0
    %v822 = vrcp.pop %v814
    %v823 = vmul.f32 %v671, %v822
    %v824 = vrcp.pop %v819
    %v825 = vmul.f32 %v673, %v824
    %v826 = vld [vmem:[#allocation7] sm:$0xff]
    %v827 = vld [vmem:[#allocation7 + $0x20] sm:$0xff]
    %v828 = vld [vmem:[#allocation7 + $0x40] sm:$0xff]
    %v829 = vld [vmem:[#allocation7 + $0x60] sm:$0xff]
    %v831 = vsel %vm113, %v823, 0
    %v834 = vsel %vm113, %v825, 0
    %836 = vmatprep.subr.mxu0 0.0
    %837 = vmatpush1.msra.mxu0 %v826
    %838 = vmatprep.subr.mxu0 0.0
    %839 = vmatpush1.msra.mxu0 %v827
    %840 = vmatprep.subr.mxu0 0.0
    %841 = vmatpush1.msra.mxu0 %v828
    %842 = vmatprep.subr.mxu0 0.0
    %843 = vmatpush1.msra.mxu0 %v829
    %844 = vmatprep.subr.mxu0 0.0
    %845 = vmatpush1.msra.mxu0 0.0
    %846 = vmatprep.subr.mxu0 0.0
    %847 = vmatpush1.msra.mxu0 0.0
    %848 = vmatprep.subr.mxu0 0.0
    %849 = vmatpush1.msra.mxu0 0.0
    %850 = vmatprep.subr.mxu0 0.0
    %851 = vmatpush1.msra.mxu0 0.0
    %852 = vmatprep.subr.mxu0 0.0
    %853 = vmatpush1.msra.mxu0 0.0
    %854 = vmatprep.subr.mxu0 0.0
    %855 = vmatpush1.msra.mxu0 0.0
    %856 = vmatprep.subr.mxu0 0.0
    %857 = vmatpush1.msra.mxu0 0.0
    %858 = vmatprep.subr.mxu0 0.0
    %859 = vmatpush1.msra.mxu0 0.0
    %860 = vmatprep.subr.mxu0 0.0
    %861 = vmatpush1.msra.mxu0 0.0
    %862 = vmatprep.subr.mxu0 0.0
    %863 = vmatpush1.msra.mxu0 0.0
    %864 = vmatprep.subr.mxu0 0.0
    %865 = vmatpush1.msra.mxu0 0.0
    %866 = vmatprep.subr.mxu0 0.0
    %867 = vmatpush1.msra.mxu0 0.0
    %868 = vmatprep.subr.mxu0 0.0
    %869 = vmatpush1.msra.mxu0 0.0
    %870 = vmatprep.subr.mxu0 0.0
    %871 = vmatpush1.msra.mxu0 0.0
    %872 = vmatprep.subr.mxu0 0.0
    %873 = vmatpush1.msra.mxu0 0.0
    %874 = vmatprep.subr.mxu0 0.0
    %875 = vmatpush1.msra.mxu0 0.0
    %876 = vmatprep.subr.mxu0 0.0
    %877 = vmatpush1.msra.mxu0 0.0
    %878 = vmatprep.subr.mxu0 0.0
    %879 = vmatpush1.msra.mxu0 0.0
    %880 = vmatprep.subr.mxu0 0.0
    %881 = vmatpush1.msra.mxu0 0.0
    %882 = vmatprep.subr.mxu0 0.0
    %883 = vmatpush1.msra.mxu0 0.0
    %884 = vmatprep.subr.mxu0 0.0
    %885 = vmatpush1.msra.mxu0 0.0
    %886 = vmatprep.subr.mxu0 0.0
    %887 = vmatpush1.msra.mxu0 0.0
    %888 = vmatprep.subr.mxu0 0.0
    %889 = vmatpush1.msra.mxu0 0.0
    %890 = vmatprep.subr.mxu0 0.0
    %891 = vmatpush1.msra.mxu0 0.0
    %892 = vmatprep.subr.mxu0 0.0
    %893 = vmatpush1.msra.mxu0 0.0
    %894 = vmatprep.subr.mxu0 0.0
    %895 = vmatpush1.msra.mxu0 0.0
    %896 = vmatprep.subr.mxu0 0.0
    %897 = vmatpush1.msra.mxu0 0.0
    %898 = vmatprep.subr.mxu0 0.0
    %899 = vmatpush1.msra.mxu0 0.0
    %900 = vmatprep.mubr.f32.mxu0 0.0
    %901 = vmatmul.mubr.f32.gmra.mrb[0].mxu0 %v831
    %v902 = vpop.f32.mrb[0].mxu0
    %v903 = vadd.f32 0.0, %v902
    %v904 = vpop.f32.mrb[0].mxu0
    %905 = vmatprep.mubr.f32.mxu0 0.0
    %906 = vmatmul.mubr.f32.gmra.mrb[0].mxu0 %v834
    %v907 = vpop.f32.mrb[0].mxu0
    %v908 = vadd.f32 0.0, %v907
    %v909 = vpop.f32.mrb[0].mxu0
    %910 = vdwg.mxu0
    %913 = vrot.lane.b32.xlu0 %v903, 64
    %v914 = vpop.permute.xlu0 %913
    %915 = vrot.lane.b32.xlu0 %v908, 64
    %v916 = vpop.permute.xlu0 %915
    %v919 = vmul.f32 %v187, %v914
    %v920 = vmul.f32 %v193, %v916
    %923 = vrot.lane.b32.xlu0 %v919, 64
    %v924 = vpop.permute.xlu0 %923
    %925 = vrot.lane.b32.xlu0 %v920, 64
    %v926 = vpop.permute.xlu0 %925
    %929 = vmatprep.subr.mxu0 0.0
    %930 = vmatpush1.msra.mxu0 %v924
    %931 = vmatprep.subr.mxu0 0.0
    %932 = vmatpush1.msra.mxu0 %v926
    %933 = vmatprep.subr.mxu0 0.0
    %934 = vmatpush1.msra.mxu0 0.0
    %935 = vmatprep.subr.mxu0 0.0
    %936 = vmatpush1.msra.mxu0 0.0
    %937 = vmatprep.subr.mxu0 0.0
    %938 = vmatpush1.msra.mxu0 0.0
    %939 = vmatprep.subr.mxu0 0.0
    %940 = vmatpush1.msra.mxu0 0.0
    %941 = vmatprep.subr.mxu0 0.0
    %942 = vmatpush1.msra.mxu0 0.0
    %943 = vmatprep.subr.mxu0 0.0
    %944 = vmatpush1.msra.mxu0 0.0
    %945 = vmatprep.subr.mxu0 0.0
    %946 = vmatpush1.msra.mxu0 0.0
    %947 = vmatprep.subr.mxu0 0.0
    %948 = vmatpush1.msra.mxu0 0.0
    %949 = vmatprep.subr.mxu0 0.0
    %950 = vmatpush1.msra.mxu0 0.0
    %951 = vmatprep.subr.mxu0 0.0
    %952 = vmatpush1.msra.mxu0 0.0
    %953 = vmatprep.subr.mxu0 0.0
    %954 = vmatpush1.msra.mxu0 0.0
    %955 = vmatprep.subr.mxu0 0.0
    %956 = vmatpush1.msra.mxu0 0.0
    %957 = vmatprep.subr.mxu0 0.0
    %958 = vmatpush1.msra.mxu0 0.0
    %959 = vmatprep.subr.mxu0 0.0
    %960 = vmatpush1.msra.mxu0 0.0
    %961 = vmatprep.subr.mxu0 0.0
    %962 = vmatpush1.msra.mxu0 0.0
    %963 = vmatprep.subr.mxu0 0.0
    %964 = vmatpush1.msra.mxu0 0.0
    %965 = vmatprep.subr.mxu0 0.0
    %966 = vmatpush1.msra.mxu0 0.0
    %967 = vmatprep.subr.mxu0 0.0
    %968 = vmatpush1.msra.mxu0 0.0
    %969 = vmatprep.subr.mxu0 0.0
    %970 = vmatpush1.msra.mxu0 0.0
    %971 = vmatprep.subr.mxu0 0.0
    %972 = vmatpush1.msra.mxu0 0.0
    %973 = vmatprep.subr.mxu0 0.0
    %974 = vmatpush1.msra.mxu0 0.0
    %975 = vmatprep.subr.mxu0 0.0
    %976 = vmatpush1.msra.mxu0 0.0
    %977 = vmatprep.subr.mxu0 0.0
    %978 = vmatpush1.msra.mxu0 0.0
    %979 = vmatprep.subr.mxu0 0.0
    %980 = vmatpush1.msra.mxu0 0.0
    %981 = vmatprep.subr.mxu0 0.0
    %982 = vmatpush1.msra.mxu0 0.0
    %983 = vmatprep.subr.mxu0 0.0
    %984 = vmatpush1.msra.mxu0 0.0
    %985 = vmatprep.subr.mxu0 0.0
    %986 = vmatpush1.msra.mxu0 0.0
    %987 = vmatprep.subr.mxu0 0.0
    %988 = vmatpush1.msra.mxu0 0.0
    %989 = vmatprep.subr.mxu0 0.0
    %990 = vmatpush1.msra.mxu0 0.0
    %991 = vmatprep.subr.mxu0 0.0
    %992 = vmatpush1.msra.mxu0 0.0
    %993 = vmatprep.mubr.f32.mxu0 0.0
    %994 = vmatmul.mubr.f32.gmra.mrb[0].mxu0 %v516
    %v995 = vpop.f32.mrb[0].mxu0
    %v996 = vadd.f32 0.0, %v995
    %v997 = vpop.f32.mrb[0].mxu0
    %998 = vdwg.mxu0
    %999 = vrot.lane.b32.xlu0 %v383, 32
    %v1000 = vpop.permute.xlu0 %999
    %1001 = vrot.lane.b32.xlu0 %v384, 32
    %v1002 = vpop.permute.xlu0 %1001
    %1003 = vrot.lane.b32.xlu0 %v385, 32
    %v1004 = vpop.permute.xlu0 %1003
    %1005 = vrot.lane.b32.xlu0 %v386, 32
    %v1006 = vpop.permute.xlu0 %1005
    %1007 = vrot.lane.b32.xlu0 %v387, 32
    %v1008 = vpop.permute.xlu0 %1007
    %1009 = vrot.lane.b32.xlu0 %v388, 32
    %v1010 = vpop.permute.xlu0 %1009
    %1011 = vrot.lane.b32.xlu0 %v389, 32
    %v1012 = vpop.permute.xlu0 %1011
    %1013 = vrot.lane.b32.xlu0 %v390, 32
    %v1014 = vpop.permute.xlu0 %1013
    %1023 = vrot.lane.b32.xlu0 %v391, 32
    %v1024 = vpop.permute.xlu0 %1023
    %v1027 = vsel %vm428, %v996, 0
    %1029 = vmatprep.subr.mxu0 0.0
    %1030 = vmatpush1.msra.mxu0 %v1000
    %1031 = vmatprep.subr.mxu0 0.0
    %1032 = vmatpush1.msra.mxu0 %v1002
    %1033 = vmatprep.subr.mxu0 0.0
    %1034 = vmatpush1.msra.mxu0 %v1004
    %1035 = vmatprep.subr.mxu0 0.0
    %1036 = vmatpush1.msra.mxu0 %v1006
    %1037 = vmatprep.subr.mxu0 0.0
    %1038 = vmatpush1.msra.mxu0 %v1008
    %1039 = vmatprep.subr.mxu0 0.0
    %1040 = vmatpush1.msra.mxu0 %v1010
    %1041 = vmatprep.subr.mxu0 0.0
    %1042 = vmatpush1.msra.mxu0 %v1012
    %1043 = vmatprep.subr.mxu0 0.0
    %1044 = vmatpush1.msra.mxu0 %v1014
    %1045 = vmatprep.subr.mxu0 0.0
    %1046 = vmatpush1.msra.mxu0 0.0
    %1047 = vmatprep.subr.mxu0 0.0
    %1048 = vmatpush1.msra.mxu0 0.0
    %1049 = vmatprep.subr.mxu0 0.0
    %1050 = vmatpush1.msra.mxu0 0.0
    %1051 = vmatprep.subr.mxu0 0.0
    %1052 = vmatpush1.msra.mxu0 0.0
    %1053 = vmatprep.subr.mxu0 0.0
    %1054 = vmatpush1.msra.mxu0 0.0
    %1055 = vmatprep.subr.mxu0 0.0
    %1056 = vmatpush1.msra.mxu0 0.0
    %1057 = vmatprep.subr.mxu0 0.0
    %1058 = vmatpush1.msra.mxu0 0.0
    %1059 = vmatprep.subr.mxu0 0.0
    %1060 = vmatpush1.msra.mxu0 0.0
    %1061 = vmatprep.subr.mxu0 0.0
    %1062 = vmatpush1.msra.mxu0 0.0
    %1063 = vmatprep.subr.mxu0 0.0
    %1064 = vmatpush1.msra.mxu0 0.0
    %1065 = vmatprep.subr.mxu0 0.0
    %1066 = vmatpush1.msra.mxu0 0.0
    %1067 = vmatprep.subr.mxu0 0.0
    %1068 = vmatpush1.msra.mxu0 0.0
    %1069 = vmatprep.subr.mxu0 0.0
    %1070 = vmatpush1.msra.mxu0 0.0
    %1071 = vmatprep.subr.mxu0 0.0
    %1072 = vmatpush1.msra.mxu0 0.0
    %1073 = vmatprep.subr.mxu0 0.0
    %1074 = vmatpush1.msra.mxu0 0.0
    %1075 = vmatprep.subr.mxu0 0.0
    %1076 = vmatpush1.msra.mxu0 0.0
    %1077 = vmatprep.subr.mxu0 0.0
    %1078 = vmatpush1.msra.mxu0 0.0
    %1079 = vmatprep.subr.mxu0 0.0
    %1080 = vmatpush1.msra.mxu0 0.0
    %1081 = vmatprep.subr.mxu0 0.0
    %1082 = vmatpush1.msra.mxu0 0.0
    %1083 = vmatprep.subr.mxu0 0.0
    %1084 = vmatpush1.msra.mxu0 0.0
    %1085 = vmatprep.subr.mxu0 0.0
    %1086 = vmatpush1.msra.mxu0 0.0
    %1087 = vmatprep.subr.mxu0 0.0
    %1088 = vmatpush1.msra.mxu0 0.0
    %1089 = vmatprep.subr.mxu0 0.0
    %1090 = vmatpush1.msra.mxu0 0.0
    %1091 = vmatprep.subr.mxu0 0.0
    %1092 = vmatpush1.msra.mxu0 0.0
    %1093 = vmatprep.mubr.f32.mxu0 0.0
    %1094 = vmatmul.mubr.f32.gmra.mrb[0].mxu0 %v1027
    %v1095 = vpop.f32.mrb[0].mxu0
    %v1096 = vadd.f32 %v1024, %v1095
    %v1097 = vpop.f32.mrb[0].mxu0
    %1098 = vdwg.mxu0
    %v1099 = vtanh.pop %v1096
    %vm1100 = vcmp.ge.f32.partialorder %v84, 0.0
    %vm1101 = vcmp.ge.f32.partialorder %v85, 0.0
    %v1102 = vmul.f32 %v84, 0.1
    %v1103 = vmul.f32 %v85, 0.1
    %v1104 = vsel %vm1100, %v84, %v1102
    %v1105 = vsel %vm1101, %v85, %v1103
    %v1107 = vsel %vm514, %v87, 0
    %v1110 = vsel %vm514, %v88, 0
    %1112 = vmatprep.subr.mxu0 0.0
    %1113 = vmatpush1.msra.mxu0 %v1104
    %1114 = vmatprep.subr.mxu0 0.0
    %1115 = vmatpush1.msra.mxu0 %v1105
    %1116 = vmatprep.subr.mxu0 0.0
    %1117 = vmatpush1.msra.mxu0 0.0
    %1118 = vmatprep.subr.mxu0 0.0
    %1119 = vmatpush1.msra.mxu0 0.0
    %1120 = vmatprep.subr.mxu0 0.0
    %1121 = vmatpush1.msra.mxu0 0.0
    %1122 = vmatprep.subr.mxu0 0.0
    %1123 = vmatpush1.msra.mxu0 0.0
    %1124 = vmatprep.subr.mxu0 0.0
    %1125 = vmatpush1.msra.mxu0 0.0
    %1126 = vmatprep.subr.mxu0 0.0
    %1127 = vmatpush1.msra.mxu0 0.0
    %1128 = vmatprep.subr.mxu0 0.0
    %1129 = vmatpush1.msra.mxu0 0.0
    %1130 = vmatprep.subr.mxu0 0.0
    %1131 = vmatpush1.msra.mxu0 0.0
    %1132 = vmatprep.subr.mxu0 0.0
    %1133 = vmatpush1.msra.mxu0 0.0
    %1134 = vmatprep.subr.mxu0 0.0
    %1135 = vmatpush1.msra.mxu0 0.0
    %1136 = vmatprep.subr.mxu0 0.0
    %1137 = vmatpush1.msra.mxu0 0.0
    %1138 = vmatprep.subr.mxu0 0.0
    %1139 = vmatpush1.msra.mxu0 0.0
    %1140 = vmatprep.subr.mxu0 0.0
    %1141 = vmatpush1.msra.mxu0 0.0
    %1142 = vmatprep.subr.mxu0 0.0
    %1143 = vmatpush1.msra.mxu0 0.0
    %1144 = vmatprep.subr.mxu0 0.0
    %1145 = vmatpush1.msra.mxu0 0.0
    %1146 = vmatprep.subr.mxu0 0.0
    %1147 = vmatpush1.msra.mxu0 0.0
    %1148 = vmatprep.subr.mxu0 0.0
    %1149 = vmatpush1.msra.mxu0 0.0
    %1150 = vmatprep.subr.mxu0 0.0
    %1151 = vmatpush1.msra.mxu0 0.0
    %1152 = vmatprep.subr.mxu0 0.0
    %1153 = vmatpush1.msra.mxu0 0.0
    %1154 = vmatprep.subr.mxu0 0.0
    %1155 = vmatpush1.msra.mxu0 0.0
    %1156 = vmatprep.subr.mxu0 0.0
    %1157 = vmatpush1.msra.mxu0 0.0
    %1158 = vmatprep.subr.mxu0 0.0
    %1159 = vmatpush1.msra.mxu0 0.0
    %1160 = vmatprep.subr.mxu0 0.0
    %1161 = vmatpush1.msra.mxu0 0.0
    %1162 = vmatprep.subr.mxu0 0.0
    %1163 = vmatpush1.msra.mxu0 0.0
    %1164 = vmatprep.subr.mxu0 0.0
    %1165 = vmatpush1.msra.mxu0 0.0
    %1166 = vmatprep.subr.mxu0 0.0
    %1167 = vmatpush1.msra.mxu0 0.0
    %1168 = vmatprep.subr.mxu0 0.0
    %1169 = vmatpush1.msra.mxu0 0.0
    %1170 = vmatprep.subr.mxu0 0.0
    %1171 = vmatpush1.msra.mxu0 0.0
    %1172 = vmatprep.subr.mxu0 0.0
    %1173 = vmatpush1.msra.mxu0 0.0
    %1174 = vmatprep.subr.mxu0 0.0
    %1175 = vmatpush1.msra.mxu0 0.0
    %1176 = vmatprep.mubr.f32.mxu0 0.0
    %1177 = vmatmul.mubr.f32.gmra.mrb[0].mxu0 %v1107
    %v1178 = vpop.f32.mrb[0].mxu0
    %v1179 = vadd.f32 0.0, %v1178
    %v1180 = vpop.f32.mrb[0].mxu0
    %1181 = vmatprep.mubr.f32.mxu0 0.0
    %1182 = vmatmul.mubr.f32.gmra.mrb[0].mxu0 %v1110
    %v1183 = vpop.f32.mrb[0].mxu0
    %v1184 = vadd.f32 0.0, %v1183
    %v1185 = vpop.f32.mrb[0].mxu0
    %1186 = vdwg.mxu0
    %v1187 = vld [vmem:[#allocation7 + $0x10] sm:$0xff]
    %v1188 = vld [vmem:[#allocation7 + $0x30] sm:$0xff]
    %v1189 = vld [vmem:[#allocation7 + $0x50] sm:$0xff]
    %v1190 = vld [vmem:[#allocation7 + $0x70] sm:$0xff]
    %1193 = vrot.lane.b32.xlu0 %v189, 32
    %v1194 = vpop.permute.xlu0 %1193
    %1195 = vrot.lane.b32.xlu0 %v195, 32
    %v1196 = vpop.permute.xlu0 %1195
    %v1200 = vsel %vm113, %v1179, 0
    %v1203 = vsel %vm113, %v1184, 0
    %1205 = vmatprep.subr.mxu0 0.0
    %1206 = vmatpush1.msra.mxu0 %v1187
    %1207 = vmatprep.subr.mxu0 0.0
    %1208 = vmatpush1.msra.mxu0 %v1188
    %1209 = vmatprep.subr.mxu0 0.0
    %1210 = vmatpush1.msra.mxu0 %v1189
    %1211 = vmatprep.subr.mxu0 0.0
    %1212 = vmatpush1.msra.mxu0 %v1190
    %1213 = vmatprep.subr.mxu0 0.0
    %1214 = vmatpush1.msra.mxu0 0.0
    %1215 = vmatprep.subr.mxu0 0.0
    %1216 = vmatpush1.msra.mxu0 0.0
    %1217 = vmatprep.subr.mxu0 0.0
    %1218 = vmatpush1.msra.mxu0 0.0
    %1219 = vmatprep.subr.mxu0 0.0
    %1220 = vmatpush1.msra.mxu0 0.0
    %1221 = vmatprep.subr.mxu0 0.0
    %1222 = vmatpush1.msra.mxu0 0.0
    %1223 = vmatprep.subr.mxu0 0.0
    %1224 = vmatpush1.msra.mxu0 0.0
    %1225 = vmatprep.subr.mxu0 0.0
    %1226 = vmatpush1.msra.mxu0 0.0
    %1227 = vmatprep.subr.mxu0 0.0
    %1228 = vmatpush1.msra.mxu0 0.0
    %1229 = vmatprep.subr.mxu0 0.0
    %1230 = vmatpush1.msra.mxu0 0.0
    %1231 = vmatprep.subr.mxu0 0.0
    %1232 = vmatpush1.msra.mxu0 0.0
    %1233 = vmatprep.subr.mxu0 0.0
    %1234 = vmatpush1.msra.mxu0 0.0
    %1235 = vmatprep.subr.mxu0 0.0
    %1236 = vmatpush1.msra.mxu0 0.0
    %1237 = vmatprep.subr.mxu0 0.0
    %1238 = vmatpush1.msra.mxu0 0.0
    %1239 = vmatprep.subr.mxu0 0.0
    %1240 = vmatpush1.msra.mxu0 0.0
    %1241 = vmatprep.subr.mxu0 0.0
    %1242 = vmatpush1.msra.mxu0 0.0
    %1243 = vmatprep.subr.mxu0 0.0
    %1244 = vmatpush1.msra.mxu0 0.0
    %1245 = vmatprep.subr.mxu0 0.0
    %1246 = vmatpush1.msra.mxu0 0.0
    %1247 = vmatprep.subr.mxu0 0.0
    %1248 = vmatpush1.msra.mxu0 0.0
    %1249 = vmatprep.subr.mxu0 0.0
    %1250 = vmatpush1.msra.mxu0 0.0
    %1251 = vmatprep.subr.mxu0 0.0
    %1252 = vmatpush1.msra.mxu0 0.0
    %1253 = vmatprep.subr.mxu0 0.0
    %1254 = vmatpush1.msra.mxu0 0.0
    %1255 = vmatprep.subr.mxu0 0.0
    %1256 = vmatpush1.msra.mxu0 0.0
    %1257 = vmatprep.subr.mxu0 0.0
    %1258 = vmatpush1.msra.mxu0 0.0
    %1259 = vmatprep.subr.mxu0 0.0
    %1260 = vmatpush1.msra.mxu0 0.0
    %1261 = vmatprep.subr.mxu0 0.0
    %1262 = vmatpush1.msra.mxu0 0.0
    %1263 = vmatprep.subr.mxu0 0.0
    %1264 = vmatpush1.msra.mxu0 0.0
    %1265 = vmatprep.subr.mxu0 0.0
    %1266 = vmatpush1.msra.mxu0 0.0
    %1267 = vmatprep.subr.mxu0 0.0
    %1268 = vmatpush1.msra.mxu0 0.0
    %1269 = vmatprep.mubr.f32.mxu0 0.0
    %1270 = vmatmul.mubr.f32.gmra.mrb[0].mxu0 %v1200
    %v1271 = vpop.f32.mrb[0].mxu0
    %v1272 = vadd.f32 %v1194, %v1271
    %v1273 = vpop.f32.mrb[0].mxu0
    %1274 = vmatprep.mubr.f32.mxu0 0.0
    %1275 = vmatmul.mubr.f32.gmra.mrb[0].mxu0 %v1203
    %v1276 = vpop.f32.mrb[0].mxu0
    %v1277 = vadd.f32 %v1196, %v1276
    %v1278 = vpop.f32.mrb[0].mxu0
    %1279 = vdwg.mxu0
    %vm1280 = vcmp.ge.f32.partialorder %v1272, 0.0
    %vm1281 = vcmp.ge.f32.partialorder %v1277, 0.0
    %v1282 = vmul.f32 %v1272, 0.1
    %v1283 = vmul.f32 %v1277, 0.1
    %v1284 = vsel %vm1280, %v1272, %v1282
    %v1285 = vsel %vm1281, %v1277, %v1283
    %1286 = vrot.lane.b32.xlu0 %v294, 32
    %v1287 = vpop.permute.xlu0 %1286
    %v1288 = vsel %vm302, %v1287, 0
    %1290 = vmatprep.subr.mxu0 0.0
    %1291 = vmatpush1.msra.mxu0 %v1288
    %1292 = vmatprep.subr.mxu0 0.0
    %1293 = vmatpush1.msra.mxu0 0.0
    %1294 = vmatprep.subr.mxu0 0.0
    %1295 = vmatpush1.msra.mxu0 0.0
    %1296 = vmatprep.subr.mxu0 0.0
    %1297 = vmatpush1.msra.mxu0 0.0
    %1298 = vmatprep.subr.mxu0 0.0
    %1299 = vmatpush1.msra.mxu0 0.0
    %1300 = vmatprep.subr.mxu0 0.0
    %1301 = vmatpush1.msra.mxu0 0.0
    %1302 = vmatprep.subr.mxu0 0.0
    %1303 = vmatpush1.msra.mxu0 0.0
    %1304 = vmatprep.subr.mxu0 0.0
    %1305 = vmatpush1.msra.mxu0 0.0
    %1306 = vmatprep.subr.mxu0 0.0
    %1307 = vmatpush1.msra.mxu0 0.0
    %1308 = vmatprep.subr.mxu0 0.0
    %1309 = vmatpush1.msra.mxu0 0.0
    %1310 = vmatprep.subr.mxu0 0.0
    %1311 = vmatpush1.msra.mxu0 0.0
    %1312 = vmatprep.subr.mxu0 0.0
    %1313 = vmatpush1.msra.mxu0 0.0
    %1314 = vmatprep.subr.mxu0 0.0
    %1315 = vmatpush1.msra.mxu0 0.0
    %1316 = vmatprep.subr.mxu0 0.0
    %1317 = vmatpush1.msra.mxu0 0.0
    %1318 = vmatprep.subr.mxu0 0.0
    %1319 = vmatpush1.msra.mxu0 0.0
    %1320 = vmatprep.subr.mxu0 0.0
    %1321 = vmatpush1.msra.mxu0 0.0
    %1322 = vmatprep.subr.mxu0 0.0
    %1323 = vmatpush1.msra.mxu0 0.0
    %1324 = vmatprep.subr.mxu0 0.0
    %1325 = vmatpush1.msra.mxu0 0.0
    %1326 = vmatprep.subr.mxu0 0.0
    %1327 = vmatpush1.msra.mxu0 0.0
    %1328 = vmatprep.subr.mxu0 0.0
    %1329 = vmatpush1.msra.mxu0 0.0
    %1330 = vmatprep.subr.mxu0 0.0
    %1331 = vmatpush1.msra.mxu0 0.0
    %1332 = vmatprep.subr.mxu0 0.0
    %1333 = vmatpush1.msra.mxu0 0.0
    %1334 = vmatprep.subr.mxu0 0.0
    %1335 = vmatpush1.msra.mxu0 0.0
    %1336 = vmatprep.subr.mxu0 0.0
    %1337 = vmatpush1.msra.mxu0 0.0
    %1338 = vmatprep.subr.mxu0 0.0
    %1339 = vmatpush1.msra.mxu0 0.0
    %1340 = vmatprep.subr.mxu0 0.0
    %1341 = vmatpush1.msra.mxu0 0.0
    %1342 = vmatprep.subr.mxu0 0.0
    %1343 = vmatpush1.msra.mxu0 0.0
    %1344 = vmatprep.subr.mxu0 0.0
    %1345 = vmatpush1.msra.mxu0 0.0
    %1346 = vmatprep.subr.mxu0 0.0
    %1347 = vmatpush1.msra.mxu0 0.0
    %1348 = vmatprep.subr.mxu0 0.0
    %1349 = vmatpush1.msra.mxu0 0.0
    %1350 = vmatprep.subr.mxu0 0.0
    %1351 = vmatpush1.msra.mxu0 0.0
    %1352 = vmatprep.subr.mxu0 0.0
    %1353 = vmatpush1.msra.mxu0 0.0
    %1354 = vmatprep.mubr.f32.mxu0 0.0
    %1355 = vmatmul.mubr.f32.gmra.mrb[0].mxu0 %v297
    %v1356 = vpop.f32.mrb[0].mxu0
    %v1357 = vadd.f32 0.0, %v1356
    %v1358 = vpop.f32.mrb[0].mxu0
    %1359 = vmatprep.mubr.f32.mxu0 0.0
    %1360 = vmatmul.mubr.f32.gmra.mrb[0].mxu0 %v300
    %v1361 = vpop.f32.mrb[0].mxu0
    %v1362 = vadd.f32 0.0, %v1361
    %v1363 = vpop.f32.mrb[0].mxu0
    %1364 = vdwg.mxu0
    %v1365 = vld [vmem:[#allocation7 + $0x8] sm:$0xff]
    %v1366 = vld [vmem:[#allocation7 + $0x28] sm:$0xff]
    %v1367 = vld [vmem:[#allocation7 + $0x48] sm:$0xff]
    %v1368 = vld [vmem:[#allocation7 + $0x68] sm:$0xff]
    %1373 = vrot.lane.b32.xlu0 %v1365, 96
    %v1374 = vpop.permute.xlu0 %1373
    %1375 = vrot.lane.b32.xlu0 %v1366, 96
    %v1376 = vpop.permute.xlu0 %1375
    %1377 = vrot.lane.b32.xlu0 %v1367, 96
    %v1378 = vpop.permute.xlu0 %1377
    %1379 = vrot.lane.b32.xlu0 %v1368, 96
    %v1380 = vpop.permute.xlu0 %1379
    %v1386 = vsel %vm113, %v1357, 0
    %v1389 = vsel %vm113, %v1362, 0
    %1391 = vmatprep.subr.mxu0 0.0
    %1392 = vmatpush1.msra.mxu0 %v1374
    %1393 = vmatprep.subr.mxu0 0.0
    %1394 = vmatpush1.msra.mxu0 %v1376
    %1395 = vmatprep.subr.mxu0 0.0
    %1396 = vmatpush1.msra.mxu0 %v1378
    %1397 = vmatprep.subr.mxu0 0.0
    %1398 = vmatpush1.msra.mxu0 %v1380
    %1399 = vmatprep.subr.mxu0 0.0
    %1400 = vmatpush1.msra.mxu0 0.0
    %1401 = vmatprep.subr.mxu0 0.0
    %1402 = vmatpush1.msra.mxu0 0.0
    %1403 = vmatprep.subr.mxu0 0.0
    %1404 = vmatpush1.msra.mxu0 0.0
    %1405 = vmatprep.subr.mxu0 0.0
    %1406 = vmatpush1.msra.mxu0 0.0
    %1407 = vmatprep.subr.mxu0 0.0
    %1408 = vmatpush1.msra.mxu0 0.0
    %1409 = vmatprep.subr.mxu0 0.0
    %1410 = vmatpush1.msra.mxu0 0.0
    %1411 = vmatprep.subr.mxu0 0.0
    %1412 = vmatpush1.msra.mxu0 0.0
    %1413 = vmatprep.subr.mxu0 0.0
    %1414 = vmatpush1.msra.mxu0 0.0
    %1415 = vmatprep.subr.mxu0 0.0
    %1416 = vmatpush1.msra.mxu0 0.0
    %1417 = vmatprep.subr.mxu0 0.0
    %1418 = vmatpush1.msra.mxu0 0.0
    %1419 = vmatprep.subr.mxu0 0.0
    %1420 = vmatpush1.msra.mxu0 0.0
    %1421 = vmatprep.subr.mxu0 0.0
    %1422 = vmatpush1.msra.mxu0 0.0
    %1423 = vmatprep.subr.mxu0 0.0
    %1424 = vmatpush1.msra.mxu0 0.0
    %1425 = vmatprep.subr.mxu0 0.0
    %1426 = vmatpush1.msra.mxu0 0.0
    %1427 = vmatprep.subr.mxu0 0.0
    %1428 = vmatpush1.msra.mxu0 0.0
    %1429 = vmatprep.subr.mxu0 0.0
    %1430 = vmatpush1.msra.mxu0 0.0
    %1431 = vmatprep.subr.mxu0 0.0
    %1432 = vmatpush1.msra.mxu0 0.0
    %1433 = vmatprep.subr.mxu0 0.0
    %1434 = vmatpush1.msra.mxu0 0.0
    %1435 = vmatprep.subr.mxu0 0.0
    %1436 = vmatpush1.msra.mxu0 0.0
    %1437 = vmatprep.subr.mxu0 0.0
    %1438 = vmatpush1.msra.mxu0 0.0
    %1439 = vmatprep.subr.mxu0 0.0
    %1440 = vmatpush1.msra.mxu0 0.0
    %1441 = vmatprep.subr.mxu0 0.0
    %1442 = vmatpush1.msra.mxu0 0.0
    %1443 = vmatprep.subr.mxu0 0.0
    %1444 = vmatpush1.msra.mxu0 0.0
    %1445 = vmatprep.subr.mxu0 0.0
    %1446 = vmatpush1.msra.mxu0 0.0
    %1447 = vmatprep.subr.mxu0 0.0
    %1448 = vmatpush1.msra.mxu0 0.0
    %1449 = vmatprep.subr.mxu0 0.0
    %1450 = vmatpush1.msra.mxu0 0.0
    %1451 = vmatprep.subr.mxu0 0.0
    %1452 = vmatpush1.msra.mxu0 0.0
    %1453 = vmatprep.subr.mxu0 0.0
    %1454 = vmatpush1.msra.mxu0 0.0
    %1455 = vmatprep.mubr.f32.mxu0 0.0
    %1456 = vmatmul.mubr.f32.gmra.mrb[0].mxu0 %v1386
    %v1457 = vpop.f32.mrb[0].mxu0
    %v1458 = vadd.f32 0.0, %v1457
    %v1459 = vpop.f32.mrb[0].mxu0
    %1460 = vmatprep.mubr.f32.mxu0 0.0
    %1461 = vmatmul.mubr.f32.gmra.mrb[0].mxu0 %v1389
    %v1462 = vpop.f32.mrb[0].mxu0
    %v1463 = vadd.f32 0.0, %v1462
    %v1464 = vpop.f32.mrb[0].mxu0
    %1465 = vdwg.mxu0
    %v1467 = vsel %vm113, %v1284, 0
    %v1470 = vsel %vm113, %v1285, 0
    %1472 = vmatprep.subr.mxu0 0.0
    %1473 = vmatpush1.msra.mxu0 %v1365
    %1474 = vmatprep.subr.mxu0 0.0
    %1475 = vmatpush1.msra.mxu0 %v1366
    %1476 = vmatprep.subr.mxu0 0.0
    %1477 = vmatpush1.msra.mxu0 %v1367
    %1478 = vmatprep.subr.mxu0 0.0
    %1479 = vmatpush1.msra.mxu0 %v1368
    %1480 = vmatprep.subr.mxu0 0.0
    %1481 = vmatpush1.msra.mxu0 0.0
    %1482 = vmatprep.subr.mxu0 0.0
    %1483 = vmatpush1.msra.mxu0 0.0
    %1484 = vmatprep.subr.mxu0 0.0
    %1485 = vmatpush1.msra.mxu0 0.0
    %1486 = vmatprep.subr.mxu0 0.0
    %1487 = vmatpush1.msra.mxu0 0.0
    %1488 = vmatprep.subr.mxu0 0.0
    %1489 = vmatpush1.msra.mxu0 0.0
    %1490 = vmatprep.subr.mxu0 0.0
    %1491 = vmatpush1.msra.mxu0 0.0
    %1492 = vmatprep.subr.mxu0 0.0
    %1493 = vmatpush1.msra.mxu0 0.0
    %1494 = vmatprep.subr.mxu0 0.0
    %1495 = vmatpush1.msra.mxu0 0.0
    %1496 = vmatprep.subr.mxu0 0.0
    %1497 = vmatpush1.msra.mxu0 0.0
    %1498 = vmatprep.subr.mxu0 0.0
    %1499 = vmatpush1.msra.mxu0 0.0
    %1500 = vmatprep.subr.mxu0 0.0
    %1501 = vmatpush1.msra.mxu0 0.0
    %1502 = vmatprep.subr.mxu0 0.0
    %1503 = vmatpush1.msra.mxu0 0.0
    %1504 = vmatprep.subr.mxu0 0.0
    %1505 = vmatpush1.msra.mxu0 0.0
    %1506 = vmatprep.subr.mxu0 0.0
    %1507 = vmatpush1.msra.mxu0 0.0
    %1508 = vmatprep.subr.mxu0 0.0
    %1509 = vmatpush1.msra.mxu0 0.0
    %1510 = vmatprep.subr.mxu0 0.0
    %1511 = vmatpush1.msra.mxu0 0.0
    %1512 = vmatprep.subr.mxu0 0.0
    %1513 = vmatpush1.msra.mxu0 0.0
    %1514 = vmatprep.subr.mxu0 0.0
    %1515 = vmatpush1.msra.mxu0 0.0
    %1516 = vmatprep.subr.mxu0 0.0
    %1517 = vmatpush1.msra.mxu0 0.0
    %1518 = vmatprep.subr.mxu0 0.0
    %1519 = vmatpush1.msra.mxu0 0.0
    %1520 = vmatprep.subr.mxu0 0.0
    %1521 = vmatpush1.msra.mxu0 0.0
    %1522 = vmatprep.subr.mxu0 0.0
    %1523 = vmatpush1.msra.mxu0 0.0
    %1524 = vmatprep.subr.mxu0 0.0
    %1525 = vmatpush1.msra.mxu0 0.0
    %1526 = vmatprep.subr.mxu0 0.0
    %1527 = vmatpush1.msra.mxu0 0.0
    %1528 = vmatprep.subr.mxu0 0.0
    %1529 = vmatpush1.msra.mxu0 0.0
    %1530 = vmatprep.subr.mxu0 0.0
    %1531 = vmatpush1.msra.mxu0 0.0
    %1532 = vmatprep.subr.mxu0 0.0
    %1533 = vmatpush1.msra.mxu0 0.0
    %1534 = vmatprep.subr.mxu0 0.0
    %1535 = vmatpush1.msra.mxu0 0.0
    %1536 = vmatprep.mubr.f32.mxu0 0.0
    %1537 = vmatmul.mubr.f32.gmra.mrb[0].mxu0 %v1467
    %v1538 = vpop.f32.mrb[0].mxu0
    %v1539 = vadd.f32 %v1458, %v1538
    %v1540 = vpop.f32.mrb[0].mxu0
    %1541 = vmatprep.mubr.f32.mxu0 0.0
    %1542 = vmatmul.mubr.f32.gmra.mrb[0].mxu0 %v1470
    %v1543 = vpop.f32.mrb[0].mxu0
    %v1544 = vadd.f32 %v1463, %v1543
    %v1545 = vpop.f32.mrb[0].mxu0
    %1546 = vdwg.mxu0
    %v1547 = vld [vmem:[#allocation7 + $0x108] ss:$0 sm:$0xff]
    %v1548 = vadd.f32 %v1539, %v1547
    %v1549 = vadd.f32 %v1544, %v1547
    %v1550 = vxor.u32 %v1548, 2147483648
    %v1551 = vxor.u32 %v1549, 2147483648
    %v1552 = vmul.f32 %v1550, 1.442695
    %v1553 = vpow.pop %v1552
    %v1554 = vmul.f32 %v1551, 1.442695
    %v1555 = vpow.pop %v1554
    %v1556 = vadd.f32 %v1553, 1.0
    %v1557 = vadd.f32 %v1555, 1.0
    %v1558 = vrcp.pop %v1556
    %v1559 = vmul.f32 1.0, %v1558
    %v1560 = vrcp.pop %v1557
    %v1561 = vmul.f32 1.0, %v1560
    %v1562 = vmul.f32 %v1559, %v1357
    %v1563 = vmul.f32 %v1561, %v1362
    %v1564 = vsub.f32 1.0, %v1559
    %v1565 = vsub.f32 1.0, %v1561
    %v1566 = vmul.f32 %v1564, %v1284
    %v1567 = vmul.f32 %v1565, %v1285
    %v1568 = vadd.f32 %v1562, %v1566
    %v1569 = vadd.f32 %v1563, %v1567
    %v1570 = vld [vmem:[#allocation7 + $0x110] ss:$0 sm:$0xff]
    %1575 = vrot.lane.b32.xlu0 %v1187, 96
    %v1576 = vpop.permute.xlu0 %1575
    %1577 = vrot.lane.b32.xlu0 %v1188, 96
    %v1578 = vpop.permute.xlu0 %1577
    %1579 = vrot.lane.b32.xlu0 %v1189, 96
    %v1580 = vpop.permute.xlu0 %1579
    %1581 = vrot.lane.b32.xlu0 %v1190, 96
    %v1582 = vpop.permute.xlu0 %1581
    %1588 = vrot.lane.b32.xlu0 %v1570, 96
    %v1589 = vpop.permute.xlu0 %1588
    %v1592 = vsel %vm113, %v1568, 0
    %v1595 = vsel %vm113, %v1569, 0
    %1597 = vmatprep.subr.mxu0 0.0
    %1598 = vmatpush1.msra.mxu0 %v1576
    %1599 = vmatprep.subr.mxu0 0.0
    %1600 = vmatpush1.msra.mxu0 %v1578
    %1601 = vmatprep.subr.mxu0 0.0
    %1602 = vmatpush1.msra.mxu0 %v1580
    %1603 = vmatprep.subr.mxu0 0.0
    %1604 = vmatpush1.msra.mxu0 %v1582
    %1605 = vmatprep.subr.mxu0 0.0
    %1606 = vmatpush1.msra.mxu0 0.0
    %1607 = vmatprep.subr.mxu0 0.0
    %1608 = vmatpush1.msra.mxu0 0.0
    %1609 = vmatprep.subr.mxu0 0.0
    %1610 = vmatpush1.msra.mxu0 0.0
    %1611 = vmatprep.subr.mxu0 0.0
    %1612 = vmatpush1.msra.mxu0 0.0
    %1613 = vmatprep.subr.mxu0 0.0
    %1614 = vmatpush1.msra.mxu0 0.0
    %1615 = vmatprep.subr.mxu0 0.0
    %1616 = vmatpush1.msra.mxu0 0.0
    %1617 = vmatprep.subr.mxu0 0.0
    %1618 = vmatpush1.msra.mxu0 0.0
    %1619 = vmatprep.subr.mxu0 0.0
    %1620 = vmatpush1.msra.mxu0 0.0
    %1621 = vmatprep.subr.mxu0 0.0
    %1622 = vmatpush1.msra.mxu0 0.0
    %1623 = vmatprep.subr.mxu0 0.0
    %1624 = vmatpush1.msra.mxu0 0.0
    %1625 = vmatprep.subr.mxu0 0.0
    %1626 = vmatpush1.msra.mxu0 0.0
    %1627 = vmatprep.subr.mxu0 0.0
    %1628 = vmatpush1.msra.mxu0 0.0
    %1629 = vmatprep.subr.mxu0 0.0
    %1630 = vmatpush1.msra.mxu0 0.0
    %1631 = vmatprep.subr.mxu0 0.0
    %1632 = vmatpush1.msra.mxu0 0.0
    %1633 = vmatprep.subr.mxu0 0.0
    %1634 = vmatpush1.msra.mxu0 0.0
    %1635 = vmatprep.subr.mxu0 0.0
    %1636 = vmatpush1.msra.mxu0 0.0
    %1637 = vmatprep.subr.mxu0 0.0
    %1638 = vmatpush1.msra.mxu0 0.0
    %1639 = vmatprep.subr.mxu0 0.0
    %1640 = vmatpush1.msra.mxu0 0.0
    %1641 = vmatprep.subr.mxu0 0.0
    %1642 = vmatpush1.msra.mxu0 0.0
    %1643 = vmatprep.subr.mxu0 0.0
    %1644 = vmatpush1.msra.mxu0 0.0
    %1645 = vmatprep.subr.mxu0 0.0
    %1646 = vmatpush1.msra.mxu0 0.0
    %1647 = vmatprep.subr.mxu0 0.0
    %1648 = vmatpush1.msra.mxu0 0.0
    %1649 = vmatprep.subr.mxu0 0.0
    %1650 = vmatpush1.msra.mxu0 0.0
    %1651 = vmatprep.subr.mxu0 0.0
    %1652 = vmatpush1.msra.mxu0 0.0
    %1653 = vmatprep.subr.mxu0 0.0
    %1654 = vmatpush1.msra.mxu0 0.0
    %1655 = vmatprep.subr.mxu0 0.0
    %1656 = vmatpush1.msra.mxu0 0.0
    %1657 = vmatprep.subr.mxu0 0.0
    %1658 = vmatpush1.msra.mxu0 0.0
    %1659 = vmatprep.subr.mxu0 0.0
    %1660 = vmatpush1.msra.mxu0 0.0
    %1661 = vmatprep.mubr.f32.mxu0 0.0
    %1662 = vmatmul.mubr.f32.gmra.mrb[0].mxu0 %v1592
    %v1663 = vpop.f32.mrb[0].mxu0
    %v1664 = vadd.f32 %v1589, %v1663
    %v1665 = vpop.f32.mrb[0].mxu0
    %1666 = vmatprep.mubr.f32.mxu0 0.0
    %1667 = vmatmul.mubr.f32.gmra.mrb[0].mxu0 %v1595
    %v1668 = vpop.f32.mrb[0].mxu0
    %v1669 = vadd.f32 %v1589, %v1668
    %v1670 = vpop.f32.mrb[0].mxu0
    %1671 = vdwg.mxu0
    %v1672 = vadd.f32 %v189, %v1664
    %v1673 = vadd.f32 %v195, %v1669
    %v1674 = vxor.u32 %v1672, 2147483648
    %v1675 = vxor.u32 %v1673, 2147483648
    %v1676 = vmul.f32 %v1674, 1.442695
    %v1677 = vpow.pop %v1676
    %v1678 = vmul.f32 %v1675, 1.442695
    %v1679 = vpow.pop %v1678
    %v1680 = vadd.f32 %v1677, 1.0
    %v1681 = vadd.f32 %v1679, 1.0
    %v1682 = vrcp.pop %v1680
    %v1683 = vmul.f32 1.0, %v1682
    %v1684 = vrcp.pop %v1681
    %v1685 = vmul.f32 1.0, %v1684
    %1688 = vrot.lane.b32.xlu0 %v1664, 64
    %v1689 = vpop.permute.xlu0 %1688
    %1690 = vrot.lane.b32.xlu0 %v1669, 64
    %v1691 = vpop.permute.xlu0 %1690
    %v1694 = vmul.f32 %v1683, %v1689
    %v1695 = vmul.f32 %v1685, %v1691
    %1698 = vrot.lane.b32.xlu0 %v1694, 64
    %v1699 = vpop.permute.xlu0 %1698
    %1700 = vrot.lane.b32.xlu0 %v1695, 64
    %v1701 = vpop.permute.xlu0 %1700
    %v1704 = vadd.f32 %v189, %v1699
    %v1705 = vadd.f32 %v195, %v1701
    %v1706 = vtanh.pop %v1704
    %v1707 = vtanh.pop %v1705
    %v1708 = vsub.f32 1.0, %v1683
    %v1709 = vsub.f32 1.0, %v1685
    %1712 = vrot.lane.b32.xlu0 %v1706, 96
    %v1713 = vpop.permute.xlu0 %1712
    %1714 = vrot.lane.b32.xlu0 %v1707, 96
    %v1715 = vpop.permute.xlu0 %1714
    %v1718 = vmul.f32 %v1708, %v1713
    %v1719 = vmul.f32 %v1709, %v1715
    %1720 = vrot.lane.b32.xlu0 %v1568, 32
    %v1721 = vpop.permute.xlu0 %1720
    %1722 = vrot.lane.b32.xlu0 %v1569, 32
    %v1723 = vpop.permute.xlu0 %1722
    %v1726 = vmul.f32 %v1683, %v1721
    %v1727 = vmul.f32 %v1685, %v1723
    %v1728 = vadd.f32 %v1718, %v1726
    %v1729 = vadd.f32 %v1719, %v1727
    %1730 = vrot.lane.b32.xlu0 %v1365, 32
    %v1731 = vpop.permute.xlu0 %1730
    %1732 = vrot.lane.b32.xlu0 %v1366, 32
    %v1733 = vpop.permute.xlu0 %1732
    %1734 = vrot.lane.b32.xlu0 %v1367, 32
    %v1735 = vpop.permute.xlu0 %1734
    %1736 = vrot.lane.b32.xlu0 %v1368, 32
    %v1737 = vpop.permute.xlu0 %1736
    %v1743 = vsel %vm113, %v1099, 0
    %1745 = vmatprep.subr.mxu0 0.0
    %1746 = vmatpush1.msra.mxu0 %v1731
    %1747 = vmatprep.subr.mxu0 0.0
    %1748 = vmatpush1.msra.mxu0 %v1733
    %1749 = vmatprep.subr.mxu0 0.0
    %1750 = vmatpush1.msra.mxu0 %v1735
    %1751 = vmatprep.subr.mxu0 0.0
    %1752 = vmatpush1.msra.mxu0 %v1737
    %1753 = vmatprep.subr.mxu0 0.0
    %1754 = vmatpush1.msra.mxu0 0.0
    %1755 = vmatprep.subr.mxu0 0.0
    %1756 = vmatpush1.msra.mxu0 0.0
    %1757 = vmatprep.subr.mxu0 0.0
    %1758 = vmatpush1.msra.mxu0 0.0
    %1759 = vmatprep.subr.mxu0 0.0
    %1760 = vmatpush1.msra.mxu0 0.0
    %1761 = vmatprep.subr.mxu0 0.0
    %1762 = vmatpush1.msra.mxu0 0.0
    %1763 = vmatprep.subr.mxu0 0.0
    %1764 = vmatpush1.msra.mxu0 0.0
    %1765 = vmatprep.subr.mxu0 0.0
    %1766 = vmatpush1.msra.mxu0 0.0
    %1767 = vmatprep.subr.mxu0 0.0
    %1768 = vmatpush1.msra.mxu0 0.0
    %1769 = vmatprep.subr.mxu0 0.0
    %1770 = vmatpush1.msra.mxu0 0.0
    %1771 = vmatprep.subr.mxu0 0.0
    %1772 = vmatpush1.msra.mxu0 0.0
    %1773 = vmatprep.subr.mxu0 0.0
    %1774 = vmatpush1.msra.mxu0 0.0
    %1775 = vmatprep.subr.mxu0 0.0
    %1776 = vmatpush1.msra.mxu0 0.0
    %1777 = vmatprep.subr.mxu0 0.0
    %1778 = vmatpush1.msra.mxu0 0.0
    %1779 = vmatprep.subr.mxu0 0.0
    %1780 = vmatpush1.msra.mxu0 0.0
    %1781 = vmatprep.subr.mxu0 0.0
    %1782 = vmatpush1.msra.mxu0 0.0
    %1783 = vmatprep.subr.mxu0 0.0
    %1784 = vmatpush1.msra.mxu0 0.0
    %1785 = vmatprep.subr.mxu0 0.0
    %1786 = vmatpush1.msra.mxu0 0.0
    %1787 = vmatprep.subr.mxu0 0.0
    %1788 = vmatpush1.msra.mxu0 0.0
    %1789 = vmatprep.subr.mxu0 0.0
    %1790 = vmatpush1.msra.mxu0 0.0
    %1791 = vmatprep.subr.mxu0 0.0
    %1792 = vmatpush1.msra.mxu0 0.0
    %1793 = vmatprep.subr.mxu0 0.0
    %1794 = vmatpush1.msra.mxu0 0.0
    %1795 = vmatprep.subr.mxu0 0.0
    %1796 = vmatpush1.msra.mxu0 0.0
    %1797 = vmatprep.subr.mxu0 0.0
    %1798 = vmatpush1.msra.mxu0 0.0
    %1799 = vmatprep.subr.mxu0 0.0
    %1800 = vmatpush1.msra.mxu0 0.0
    %1801 = vmatprep.subr.mxu0 0.0
    %1802 = vmatpush1.msra.mxu0 0.0
    %1803 = vmatprep.subr.mxu0 0.0
    %1804 = vmatpush1.msra.mxu0 0.0
    %1805 = vmatprep.subr.mxu0 0.0
    %1806 = vmatpush1.msra.mxu0 0.0
    %1807 = vmatprep.subr.mxu0 0.0
    %1808 = vmatpush1.msra.mxu0 0.0
    %1809 = vmatprep.mubr.f32.mxu0 0.0
    %1810 = vmatmul.mubr.f32.gmra.mrb[0].mxu0 %v1743
    %v1811 = vpop.f32.mrb[0].mxu0
    %v1812 = vadd.f32 0.0, %v1811
    %v1813 = vpop.f32.mrb[0].mxu0
    %1814 = vdwg.mxu0
    %1815 = vrot.lane.b32.xlu0 %v294, 64
    %v1816 = vpop.permute.xlu0 %1815
    %1817 = vrot.lane.b32.xlu0 %v1365, 64
    %v1818 = vpop.permute.xlu0 %1817
    %1819 = vrot.lane.b32.xlu0 %v1366, 64
    %v1820 = vpop.permute.xlu0 %1819
    %1821 = vrot.lane.b32.xlu0 %v1367, 64
    %v1822 = vpop.permute.xlu0 %1821
    %1823 = vrot.lane.b32.xlu0 %v1368, 64
    %v1824 = vpop.permute.xlu0 %1823
    %v1829 = vsel %vm113, %v1816, 0
    %1831 = vmatprep.subr.mxu0 0.0
    %1832 = vmatpush1.msra.mxu0 %v1818
    %1833 = vmatprep.subr.mxu0 0.0
    %1834 = vmatpush1.msra.mxu0 %v1820
    %1835 = vmatprep.subr.mxu0 0.0
    %1836 = vmatpush1.msra.mxu0 %v1822
    %1837 = vmatprep.subr.mxu0 0.0
    %1838 = vmatpush1.msra.mxu0 %v1824
    %1839 = vmatprep.subr.mxu0 0.0
    %1840 = vmatpush1.msra.mxu0 0.0
    %1841 = vmatprep.subr.mxu0 0.0
    %1842 = vmatpush1.msra.mxu0 0.0
    %1843 = vmatprep.subr.mxu0 0.0
    %1844 = vmatpush1.msra.mxu0 0.0
    %1845 = vmatprep.subr.mxu0 0.0
    %1846 = vmatpush1.msra.mxu0 0.0
    %1847 = vmatprep.subr.mxu0 0.0
    %1848 = vmatpush1.msra.mxu0 0.0
    %1849 = vmatprep.subr.mxu0 0.0
    %1850 = vmatpush1.msra.mxu0 0.0
    %1851 = vmatprep.subr.mxu0 0.0
    %1852 = vmatpush1.msra.mxu0 0.0
    %1853 = vmatprep.subr.mxu0 0.0
    %1854 = vmatpush1.msra.mxu0 0.0
    %1855 = vmatprep.subr.mxu0 0.0
    %1856 = vmatpush1.msra.mxu0 0.0
    %1857 = vmatprep.subr.mxu0 0.0
    %1858 = vmatpush1.msra.mxu0 0.0
    %1859 = vmatprep.subr.mxu0 0.0
    %1860 = vmatpush1.msra.mxu0 0.0
    %1861 = vmatprep.subr.mxu0 0.0
    %1862 = vmatpush1.msra.mxu0 0.0
    %1863 = vmatprep.subr.mxu0 0.0
    %1864 = vmatpush1.msra.mxu0 0.0
    %1865 = vmatprep.subr.mxu0 0.0
    %1866 = vmatpush1.msra.mxu0 0.0
    %1867 = vmatprep.subr.mxu0 0.0
    %1868 = vmatpush1.msra.mxu0 0.0
    %1869 = vmatprep.subr.mxu0 0.0
    %1870 = vmatpush1.msra.mxu0 0.0
    %1871 = vmatprep.subr.mxu0 0.0
    %1872 = vmatpush1.msra.mxu0 0.0
    %1873 = vmatprep.subr.mxu0 0.0
    %1874 = vmatpush1.msra.mxu0 0.0
    %1875 = vmatprep.subr.mxu0 0.0
    %1876 = vmatpush1.msra.mxu0 0.0
    %1877 = vmatprep.subr.mxu0 0.0
    %1878 = vmatpush1.msra.mxu0 0.0
    %1879 = vmatprep.subr.mxu0 0.0
    %1880 = vmatpush1.msra.mxu0 0.0
    %1881 = vmatprep.subr.mxu0 0.0
    %1882 = vmatpush1.msra.mxu0 0.0
    %1883 = vmatprep.subr.mxu0 0.0
    %1884 = vmatpush1.msra.mxu0 0.0
    %1885 = vmatprep.subr.mxu0 0.0
    %1886 = vmatpush1.msra.mxu0 0.0
    %1887 = vmatprep.subr.mxu0 0.0
    %1888 = vmatpush1.msra.mxu0 0.0
    %1889 = vmatprep.subr.mxu0 0.0
    %1890 = vmatpush1.msra.mxu0 0.0
    %1891 = vmatprep.subr.mxu0 0.0
    %1892 = vmatpush1.msra.mxu0 0.0
    %1893 = vmatprep.subr.mxu0 0.0
    %1894 = vmatpush1.msra.mxu0 0.0
    %1895 = vmatprep.mubr.f32.mxu0 0.0
    %1896 = vmatmul.mubr.f32.gmra.mrb[0].mxu0 %v1829
    %v1897 = vpop.f32.mrb[0].mxu0
    %v1898 = vadd.f32 %v1812, %v1897
    %v1899 = vpop.f32.mrb[0].mxu0
    %1900 = vdwg.mxu0
    %1902 = vrot.lane.b32.xlu0 %v1547, 64
    %v1903 = vpop.permute.xlu0 %1902
    %v1905 = vadd.f32 %v1898, %v1903
    %v1906 = vxor.u32 %v1905, 2147483648
    %v1907 = vmul.f32 %v1906, 1.442695
    %v1908 = vpow.pop %v1907
    %v1909 = vadd.f32 %v1908, 1.0
    %v1910 = vrcp.pop %v1909
    %v1911 = vmul.f32 1.0, %v1910
    %v1912 = vmul.f32 %v1911, %v1099
    %v1913 = vsub.f32 1.0, %v1911
    %v1915 = vmul.f32 %v1913, %v1816
    %v1916 = vadd.f32 %v1912, %v1915
    %v1917 = vld [vmem:[#allocation7 + $0x18] sm:$0xff]
    %v1918 = vld [vmem:[#allocation7 + $0x38] sm:$0xff]
    %v1919 = vld [vmem:[#allocation7 + $0x58] sm:$0xff]
    %v1920 = vld [vmem:[#allocation7 + $0x78] sm:$0xff]
    %v1921 = vld [vmem:[#allocation7 + $0x118] ss:$0 sm:$0xff]
    %v1923 = vsel %vm113, %v1916, 0
    %1925 = vmatprep.subr.mxu0 0.0
    %1926 = vmatpush1.msra.mxu0 %v1917
    %1927 = vmatprep.subr.mxu0 0.0
    %1928 = vmatpush1.msra.mxu0 %v1918
    %1929 = vmatprep.subr.mxu0 0.0
    %1930 = vmatpush1.msra.mxu0 %v1919
    %1931 = vmatprep.subr.mxu0 0.0
    %1932 = vmatpush1.msra.mxu0 %v1920
    %1933 = vmatprep.subr.mxu0 0.0
    %1934 = vmatpush1.msra.mxu0 0.0
    %1935 = vmatprep.subr.mxu0 0.0
    %1936 = vmatpush1.msra.mxu0 0.0
    %1937 = vmatprep.subr.mxu0 0.0
    %1938 = vmatpush1.msra.mxu0 0.0
    %1939 = vmatprep.subr.mxu0 0.0
    %1940 = vmatpush1.msra.mxu0 0.0
    %1941 = vmatprep.subr.mxu0 0.0
    %1942 = vmatpush1.msra.mxu0 0.0
    %1943 = vmatprep.subr.mxu0 0.0
    %1944 = vmatpush1.msra.mxu0 0.0
    %1945 = vmatprep.subr.mxu0 0.0
    %1946 = vmatpush1.msra.mxu0 0.0
    %1947 = vmatprep.subr.mxu0 0.0
    %1948 = vmatpush1.msra.mxu0 0.0
    %1949 = vmatprep.subr.mxu0 0.0
    %1950 = vmatpush1.msra.mxu0 0.0
    %1951 = vmatprep.subr.mxu0 0.0
    %1952 = vmatpush1.msra.mxu0 0.0
    %1953 = vmatprep.subr.mxu0 0.0
    %1954 = vmatpush1.msra.mxu0 0.0
    %1955 = vmatprep.subr.mxu0 0.0
    %1956 = vmatpush1.msra.mxu0 0.0
    %1957 = vmatprep.subr.mxu0 0.0
    %1958 = vmatpush1.msra.mxu0 0.0
    %1959 = vmatprep.subr.mxu0 0.0
    %1960 = vmatpush1.msra.mxu0 0.0
    %1961 = vmatprep.subr.mxu0 0.0
    %1962 = vmatpush1.msra.mxu0 0.0
    %1963 = vmatprep.subr.mxu0 0.0
    %1964 = vmatpush1.msra.mxu0 0.0
    %1965 = vmatprep.subr.mxu0 0.0
    %1966 = vmatpush1.msra.mxu0 0.0
    %1967 = vmatprep.subr.mxu0 0.0
    %1968 = vmatpush1.msra.mxu0 0.0
    %1969 = vmatprep.subr.mxu0 0.0
    %1970 = vmatpush1.msra.mxu0 0.0
    %1971 = vmatprep.subr.mxu0 0.0
    %1972 = vmatpush1.msra.mxu0 0.0
    %1973 = vmatprep.subr.mxu0 0.0
    %1974 = vmatpush1.msra.mxu0 0.0
    %1975 = vmatprep.subr.mxu0 0.0
    %1976 = vmatpush1.msra.mxu0 0.0
    %1977 = vmatprep.subr.mxu0 0.0
    %1978 = vmatpush1.msra.mxu0 0.0
    %1979 = vmatprep.subr.mxu0 0.0
    %1980 = vmatpush1.msra.mxu0 0.0
    %1981 = vmatprep.subr.mxu0 0.0
    %1982 = vmatpush1.msra.mxu0 0.0
    %1983 = vmatprep.subr.mxu0 0.0
    %1984 = vmatpush1.msra.mxu0 0.0
    %1985 = vmatprep.subr.mxu0 0.0
    %1986 = vmatpush1.msra.mxu0 0.0
    %1987 = vmatprep.subr.mxu0 0.0
    %1988 = vmatpush1.msra.mxu0 0.0
    %1989 = vmatprep.mubr.f32.mxu0 0.0
    %1990 = vmatmul.mubr.f32.gmra.mrb[0].mxu0 %v1923
    %v1991 = vpop.f32.mrb[0].mxu0
    %v1992 = vadd.f32 %v1921, %v1991
    %v1993 = vpop.f32.mrb[0].mxu0
    %1994 = vdwg.mxu0
    %v1995 = vadd.f32 %v290, %v1992
    %v1996 = vxor.u32 %v1995, 2147483648
    %v1997 = vmul.f32 %v1996, 1.442695
    %v1998 = vpow.pop %v1997
    %v1999 = vadd.f32 %v1998, 1.0
    %v2000 = vrcp.pop %v1999
    %v2001 = vmul.f32 1.0, %v2000
    %2003 = vrot.lane.b32.xlu0 %v1992, 64
    %v2004 = vpop.permute.xlu0 %2003
    %v2006 = vmul.f32 %v2001, %v2004
    %2008 = vrot.lane.b32.xlu0 %v2006, 64
    %v2009 = vpop.permute.xlu0 %2008
    %v2011 = vadd.f32 %v290, %v2009
    %v2012 = vtanh.pop %v2011
    %v2013 = vsub.f32 1.0, %v2001
    %2015 = vrot.lane.b32.xlu0 %v2012, 96
    %v2016 = vpop.permute.xlu0 %2015
    %v2018 = vmul.f32 %v2013, %v2016
    %2019 = vrot.lane.b32.xlu0 %v1916, 32
    %v2020 = vpop.permute.xlu0 %2019
    %v2022 = vmul.f32 %v2001, %v2020
    %v2023 = vadd.f32 %v2018, %v2022
    %2026 = vrot.lane.b32.xlu0 %v1728, 96
    %v2027 = vpop.permute.xlu0 %2026
    %2028 = vrot.lane.b32.xlu0 %v1729, 96
    %v2029 = vpop.permute.xlu0 %2028
    %2032 = vst.msk [vmem:[%s8] sm:$0xff] %vm113, %v2027
    %2033 = vst.msk [vmem:[%s8 + $0x8] sm:$0xff] %vm113, %v2029
    %2035 = vrot.lane.b32.xlu0 %v2023, 96
    %v2036 = vpop.permute.xlu0 %2035
    %vm2038 = vcmask 254976
    %2039 = vst.msk [vmem:[%s8 + $0x10] sm:$0x3] %vm2038, %v2036
    // Predicated region
    $region50: #{forward.1} parent=1 // pred_check
      _
    $region51: #{forward.1} parent=1 // pred_check_branch
      %2041 = sbr.rel (0) target = $region53
    $region52: #{forward.1} parent=1 // pred_region
      _
    $region53: #{forward.1} parent=1 // pred_fallthru
      _
    // Predicated region
    $region54: #{forward.1} parent=1 // pred_check
      _
    $region55: #{forward.1} parent=1 // pred_check_branch
      %2043 = sbr.rel (0) target = $region57
    $region56: #{forward.1} parent=1 // pred_region
      _
    $region57: #{forward.1} parent=1 // pred_fallthru
      _
    %2044 = vsyncpa [#allocation3], 1
    %2045 = vsyncpa [#allocation5], 1
    %2046 = vsyncpa [#allocation8], 1

</llo_original>
